<compile_context>
chip_gen: v6e
topology: v6e:2x2x1
jax: 0.10.0
libtpu: 0.0.40
codegen_flags: <defaults>
</compile_context>

<pallas_src>
import jax
import jax.numpy as jnp
from jax.experimental import pallas as pl
from jax.experimental.pallas import tpu as pltpu

EPS = 1e-5
N_LAYERS = 8
HAS_BN = (True, True, True, False, True, True, True, False)

IN_PAD = 112            # input_dim=100 padded to a multiple of 16 (bf16 sublanes)
OUT_PAD = 128           # lane padding for narrow feature widths (64, 8, 100)

# Tight weight packing inside one [W_ROWS, W_COLS] bf16 buffer.
# Per layer: (row_off, col_off, k_pad, out_pad); weight stored [in, out].
W_LAYOUT = {
    0: (0,   0,   112, 256),   # 100 -> 256
    1: (240, 0,   256, 128),   # 256 -> 128
    2: (496, 0,   128, 128),   # 128 -> 64  (cols 64:128 zero)
    3: (496, 128, 128, 128),   # 64  -> 8   (cols 8:128 zero)
    4: (624, 0,   128, 128),   # 8   -> 64  (cols 64:128 zero)
    5: (624, 128, 128, 128),   # 64  -> 128
    6: (112, 0,   128, 256),   # 128 -> 256
    7: (240, 128, 256, 128),   # 256 -> 100 (cols 100:128 zero)
}
W_ROWS, W_COLS = 752, 256

# Vector params in one [16, 256] f32 buffer (exactly 2x(8,128) tiles).
GAMMA_ROW = {0: 0, 1: 1, 2: 2, 4: 3, 5: 4, 6: 5}
BETA_ROW = {0: 6, 1: 7, 2: 8, 4: 9, 5: 10, 6: 11}
BIAS_ROW = {3: 12, 7: 13}      # only the two non-BN layers keep a bias
V_ROWS = 16


def autoencoder_kernel(x_ref, w_ref, v_ref, out_ref):
    # x_ref  : [N, IN_PAD]  f32, zero-padded past input_dim
    # w_ref  : [752, 256]   bf16, tightly packed per-layer weights ([in, out])
    # v_ref  : [16, 256]    f32, gamma / beta / bias rows
    # out_ref: [N, 256]     f32, lanes 0:128 padded code, 128:256 padded recon
    n_inv = 1.0 / x_ref.shape[0]                 # static batch size
    h = x_ref[...]                               # f32 activations
    for i in range(N_LAYERS):
        r0, c0, kp, op = W_LAYOUT[i]             # Python constants -> static slices
        w = w_ref[r0:r0 + kp, c0:c0 + op]        # bf16 [kp, op]
        h = jnp.dot(h.astype(jnp.bfloat16), w,
                    preferred_element_type=jnp.float32)        # f32 [N, op]
        if i in BIAS_ROW:                        # bias only where not cancelled by BN
            h = h + v_ref[BIAS_ROW[i]:BIAS_ROW[i] + 1, 0:op]
        if HAS_BN[i]:
            gamma = v_ref[GAMMA_ROW[i]:GAMMA_ROW[i] + 1, 0:op]
            beta = v_ref[BETA_ROW[i]:BETA_ROW[i] + 1, 0:op]
            mean = jnp.sum(h, axis=0, keepdims=True) * n_inv
            centered = h - mean
            var = jnp.sum(centered * centered, axis=0, keepdims=True) * n_inv
            scale = gamma * jax.lax.rsqrt(var + EPS)           # EUP rsqrt
            h = jnp.maximum(centered * scale + beta, 0.0)      # fused BN affine + ReLU
        if i == 3:                               # bottleneck -> encoded (padded)
            out_ref[:, 0:OUT_PAD] = h
    out_ref[:, OUT_PAD:2 * OUT_PAD] = h          # decoded (padded)


def init_params(key, input_dim=100, code_dim=8):
    """PyTorch-style init packed into the tight bf16 weight buffer and the
    [16, 256] f32 vector buffer."""
    dims = [(input_dim, 256), (256, 128), (128, 64), (64, code_dim),
            (code_dim, 64), (64, 128), (128, 256), (256, input_dim)]
    w_stack = jnp.zeros((W_ROWS, W_COLS), jnp.float32)
    v_stack = jnp.zeros((V_ROWS, W_COLS), jnp.float32)
    for i, (fan_in, fan_out) in enumerate(dims):
        key, kw, kb = jax.random.split(key, 3)
        bound = float(fan_in) ** -0.5
        w = jax.random.uniform(kw, (fan_in, fan_out), jnp.float32, -bound, bound)
        b = jax.random.uniform(kb, (fan_out,), jnp.float32, -bound, bound)
        r0, c0, _, _ = W_LAYOUT[i]
        w_stack = w_stack.at[r0:r0 + fan_in, c0:c0 + fan_out].set(w)
        if HAS_BN[i]:
            # Linear bias before BatchNorm cancels in the forward pass -> dropped.
            v_stack = v_stack.at[GAMMA_ROW[i], :fan_out].set(1.0)   # gamma=1, beta=0
        else:
            v_stack = v_stack.at[BIAS_ROW[i], :fan_out].set(b)
    return w_stack.astype(jnp.bfloat16), v_stack


def autoencoder_forward(x, w_stack, v_stack, input_dim=100, code_dim=8):
    n = x.shape[0]
    x_padded = jnp.zeros((n, IN_PAD), jnp.float32).at[:, :input_dim].set(
        x.astype(jnp.float32))
    vmem = pl.BlockSpec(memory_space=pltpu.MemorySpace.VMEM)
    out = pl.pallas_call(
        autoencoder_kernel,
        out_shape=jax.ShapeDtypeStruct((n, 2 * OUT_PAD), jnp.float32),
        in_specs=[vmem, vmem, vmem],
        out_specs=vmem,
    )(x_padded, w_stack, v_stack)
    encoded = out[:, :code_dim]
    decoded = out[:, OUT_PAD:OUT_PAD + input_dim]
    return encoded, decoded


def reference_forward(x, w_stack, v_stack, input_dim=100, code_dim=8):
    """Pure-JAX reference using the same packed params / precision path."""
    n = x.shape[0]
    h = jnp.zeros((n, IN_PAD), jnp.float32).at[:, :input_dim].set(
        x.astype(jnp.float32))
    encoded = None
    for i in range(N_LAYERS):
        r0, c0, kp, op = W_LAYOUT[i]
        w = w_stack[r0:r0 + kp, c0:c0 + op]
        h = jnp.dot(h.astype(jnp.bfloat16), w, preferred_element_type=jnp.float32)
        if i in BIAS_ROW:
            h = h + v_stack[BIAS_ROW[i]:BIAS_ROW[i] + 1, :op]
        if HAS_BN[i]:
            mean = jnp.mean(h, axis=0, keepdims=True)
            centered = h - mean
            var = jnp.mean(centered * centered, axis=0, keepdims=True)
            scale = v_stack[GAMMA_ROW[i]:GAMMA_ROW[i] + 1, :op] * jax.lax.rsqrt(var + EPS)
            h = jnp.maximum(centered * scale + v_stack[BETA_ROW[i]:BETA_ROW[i] + 1, :op], 0.0)
        if i == 3:
            encoded = h[:, :code_dim]
    return encoded, h[:, :input_dim]


if __name__ == "__main__":
    input_dim, code_dim, batch = 100, 8, 16

    key = jax.random.PRNGKey(0)
    key, kx = jax.random.split(key)
    x = jax.random.normal(kx, (batch, input_dim), jnp.float32)

    w_stack, v_stack = init_params(key, input_dim=input_dim, code_dim=code_dim)

    encoded, decoded = autoencoder_forward(
        x, w_stack, v_stack, input_dim=input_dim, code_dim=code_dim)
    jax.block_until_ready((encoded, decoded))

    assert encoded.shape == (batch, code_dim)
    assert decoded.shape == (batch, input_dim)
    assert bool(jnp.all(jnp.isfinite(encoded)))
    assert bool(jnp.all(jnp.isfinite(decoded)))

    enc_ref, dec_ref = reference_forward(
        x, w_stack, v_stack, input_dim=input_dim, code_dim=code_dim)
    assert bool(jnp.allclose(encoded, enc_ref, rtol=2e-2, atol=2e-2))
    assert bool(jnp.allclose(decoded, dec_ref, rtol=2e-2, atol=2e-2))

    print("KERNEL_OK")
</pallas_src>

<mosaic_0001>
module attributes {stable_mosaic.version = 11 : i64} {
  func.func @autoencoder_kernel(%arg0: memref<16x112xf32, #tpu.memory_space<vmem>>, %arg1: memref<752x256xbf16, #tpu.memory_space<vmem>>, %arg2: memref<16x256xf32, #tpu.memory_space<vmem>>, %arg3: memref<16x256xf32, #tpu.memory_space<vmem>>) attributes {dimension_semantics = [], scalar_prefetch = 0 : i64, scratch_operands = 0 : i64, tpu.core_type = #tpu.core_type<tc>} {
    %c0 = arith.constant 0 : index
    %c0_0 = arith.constant 0 : index
    %0 = vector.load %arg0[%c0, %c0_0] : memref<16x112xf32, #tpu.memory_space<vmem>>, vector<16x112xf32>
    %c0_1 = arith.constant 0 : index
    %c0_2 = arith.constant 0 : index
    %1 = vector.load %arg1[%c0_1, %c0_2] : memref<752x256xbf16, #tpu.memory_space<vmem>>, vector<112x256xbf16>
    %2 = arith.truncf %0 : vector<16x112xf32> to vector<16x112xbf16>
    %cst = arith.constant dense<0.000000e+00> : vector<16x256xf32>
    %3 = tpu.matmul %2, %1, %cst {dimension_numbers = #tpu.dot_dimension_numbers<[1], [0], [0], [1], [0, 0, 1, 1], [], []>} : vector<16x112xbf16>, vector<112x256xbf16>, vector<16x256xf32> -> vector<16x256xf32>
    %c0_3 = arith.constant 0 : index
    %c0_4 = arith.constant 0 : index
    %4 = vector.load %arg2[%c0_3, %c0_4] : memref<16x256xf32, #tpu.memory_space<vmem>>, vector<1x256xf32>
    %c6 = arith.constant 6 : index
    %c0_5 = arith.constant 0 : index
    %5 = vector.load %arg2[%c6, %c0_5] : memref<16x256xf32, #tpu.memory_space<vmem>>, vector<1x256xf32>
    %cst_6 = arith.constant dense<0.000000e+00> : vector<256xf32>
    %6 = vector.multi_reduction <add>, %3, %cst_6 [0] : vector<16x256xf32> to vector<256xf32>
    %7 = vector.shape_cast %6 : vector<256xf32> to vector<1x256xf32>
    %cst_7 = arith.constant 6.250000e-02 : f32
    %8 = vector.broadcast %cst_7 : f32 to vector<1x256xf32>
    %9 = arith.mulf %7, %8 : vector<1x256xf32>
    %10 = vector.broadcast %9 : vector<1x256xf32> to vector<16x256xf32>
    %11 = arith.subf %3, %10 : vector<16x256xf32>
    %12 = arith.mulf %11, %11 : vector<16x256xf32>
    %cst_8 = arith.constant dense<0.000000e+00> : vector<256xf32>
    %13 = vector.multi_reduction <add>, %12, %cst_8 [0] : vector<16x256xf32> to vector<256xf32>
    %14 = vector.shape_cast %13 : vector<256xf32> to vector<1x256xf32>
    %cst_9 = arith.constant 6.250000e-02 : f32
    %15 = vector.broadcast %cst_9 : f32 to vector<1x256xf32>
    %16 = arith.mulf %14, %15 : vector<1x256xf32>
    %cst_10 = arith.constant 9.99999974E-6 : f32
    %17 = vector.broadcast %cst_10 : f32 to vector<1x256xf32>
    %18 = arith.addf %16, %17 : vector<1x256xf32>
    %19 = math.rsqrt %18 : vector<1x256xf32>
    %20 = arith.mulf %4, %19 : vector<1x256xf32>
    %21 = vector.broadcast %20 : vector<1x256xf32> to vector<16x256xf32>
    %22 = arith.mulf %11, %21 : vector<16x256xf32>
    %23 = vector.broadcast %5 : vector<1x256xf32> to vector<16x256xf32>
    %24 = arith.addf %22, %23 : vector<16x256xf32>
    %cst_11 = arith.constant 0.000000e+00 : f32
    %25 = vector.broadcast %cst_11 : f32 to vector<16x256xf32>
    %26 = arith.maximumf %24, %25 : vector<16x256xf32>
    %c240 = arith.constant 240 : index
    %c0_12 = arith.constant 0 : index
    %27 = vector.load %arg1[%c240, %c0_12] : memref<752x256xbf16, #tpu.memory_space<vmem>>, vector<256x128xbf16>
    %28 = arith.truncf %26 : vector<16x256xf32> to vector<16x256xbf16>
    %cst_13 = arith.constant dense<0.000000e+00> : vector<16x128xf32>
    %29 = tpu.matmul %28, %27, %cst_13 {dimension_numbers = #tpu.dot_dimension_numbers<[1], [0], [0], [1], [0, 0, 1, 1], [], []>} : vector<16x256xbf16>, vector<256x128xbf16>, vector<16x128xf32> -> vector<16x128xf32>
    %c1 = arith.constant 1 : index
    %c0_14 = arith.constant 0 : index
    %30 = vector.load %arg2[%c1, %c0_14] : memref<16x256xf32, #tpu.memory_space<vmem>>, vector<1x128xf32>
    %c7 = arith.constant 7 : index
    %c0_15 = arith.constant 0 : index
    %31 = vector.load %arg2[%c7, %c0_15] : memref<16x256xf32, #tpu.memory_space<vmem>>, vector<1x128xf32>
    %cst_16 = arith.constant dense<0.000000e+00> : vector<128xf32>
    %32 = vector.multi_reduction <add>, %29, %cst_16 [0] : vector<16x128xf32> to vector<128xf32>
    %33 = vector.shape_cast %32 : vector<128xf32> to vector<1x128xf32>
    %cst_17 = arith.constant 6.250000e-02 : f32
    %34 = vector.broadcast %cst_17 : f32 to vector<1x128xf32>
    %35 = arith.mulf %33, %34 : vector<1x128xf32>
    %36 = vector.broadcast %35 : vector<1x128xf32> to vector<16x128xf32>
    %37 = arith.subf %29, %36 : vector<16x128xf32>
    %38 = arith.mulf %37, %37 : vector<16x128xf32>
    %cst_18 = arith.constant dense<0.000000e+00> : vector<128xf32>
    %39 = vector.multi_reduction <add>, %38, %cst_18 [0] : vector<16x128xf32> to vector<128xf32>
    %40 = vector.shape_cast %39 : vector<128xf32> to vector<1x128xf32>
    %cst_19 = arith.constant 6.250000e-02 : f32
    %41 = vector.broadcast %cst_19 : f32 to vector<1x128xf32>
    %42 = arith.mulf %40, %41 : vector<1x128xf32>
    %cst_20 = arith.constant 9.99999974E-6 : f32
    %43 = vector.broadcast %cst_20 : f32 to vector<1x128xf32>
    %44 = arith.addf %42, %43 : vector<1x128xf32>
    %45 = math.rsqrt %44 : vector<1x128xf32>
    %46 = arith.mulf %30, %45 : vector<1x128xf32>
    %47 = vector.broadcast %46 : vector<1x128xf32> to vector<16x128xf32>
    %48 = arith.mulf %37, %47 : vector<16x128xf32>
    %49 = vector.broadcast %31 : vector<1x128xf32> to vector<16x128xf32>
    %50 = arith.addf %48, %49 : vector<16x128xf32>
    %cst_21 = arith.constant 0.000000e+00 : f32
    %51 = vector.broadcast %cst_21 : f32 to vector<16x128xf32>
    %52 = arith.maximumf %50, %51 : vector<16x128xf32>
    %c496 = arith.constant 496 : index
    %c0_22 = arith.constant 0 : index
    %53 = vector.load %arg1[%c496, %c0_22] : memref<752x256xbf16, #tpu.memory_space<vmem>>, vector<128x128xbf16>
    %54 = arith.truncf %52 : vector<16x128xf32> to vector<16x128xbf16>
    %cst_23 = arith.constant dense<0.000000e+00> : vector<16x128xf32>
    %55 = tpu.matmul %54, %53, %cst_23 {dimension_numbers = #tpu.dot_dimension_numbers<[1], [0], [0], [1], [0, 0, 1, 1], [], []>} : vector<16x128xbf16>, vector<128x128xbf16>, vector<16x128xf32> -> vector<16x128xf32>
    %c2 = arith.constant 2 : index
    %c0_24 = arith.constant 0 : index
    %56 = vector.load %arg2[%c2, %c0_24] : memref<16x256xf32, #tpu.memory_space<vmem>>, vector<1x128xf32>
    %c8 = arith.constant 8 : index
    %c0_25 = arith.constant 0 : index
    %57 = vector.load %arg2[%c8, %c0_25] : memref<16x256xf32, #tpu.memory_space<vmem>>, vector<1x128xf32>
    %cst_26 = arith.constant dense<0.000000e+00> : vector<128xf32>
    %58 = vector.multi_reduction <add>, %55, %cst_26 [0] : vector<16x128xf32> to vector<128xf32>
    %59 = vector.shape_cast %58 : vector<128xf32> to vector<1x128xf32>
    %cst_27 = arith.constant 6.250000e-02 : f32
    %60 = vector.broadcast %cst_27 : f32 to vector<1x128xf32>
    %61 = arith.mulf %59, %60 : vector<1x128xf32>
    %62 = vector.broadcast %61 : vector<1x128xf32> to vector<16x128xf32>
    %63 = arith.subf %55, %62 : vector<16x128xf32>
    %64 = arith.mulf %63, %63 : vector<16x128xf32>
    %cst_28 = arith.constant dense<0.000000e+00> : vector<128xf32>
    %65 = vector.multi_reduction <add>, %64, %cst_28 [0] : vector<16x128xf32> to vector<128xf32>
    %66 = vector.shape_cast %65 : vector<128xf32> to vector<1x128xf32>
    %cst_29 = arith.constant 6.250000e-02 : f32
    %67 = vector.broadcast %cst_29 : f32 to vector<1x128xf32>
    %68 = arith.mulf %66, %67 : vector<1x128xf32>
    %cst_30 = arith.constant 9.99999974E-6 : f32
    %69 = vector.broadcast %cst_30 : f32 to vector<1x128xf32>
    %70 = arith.addf %68, %69 : vector<1x128xf32>
    %71 = math.rsqrt %70 : vector<1x128xf32>
    %72 = arith.mulf %56, %71 : vector<1x128xf32>
    %73 = vector.broadcast %72 : vector<1x128xf32> to vector<16x128xf32>
    %74 = arith.mulf %63, %73 : vector<16x128xf32>
    %75 = vector.broadcast %57 : vector<1x128xf32> to vector<16x128xf32>
    %76 = arith.addf %74, %75 : vector<16x128xf32>
    %cst_31 = arith.constant 0.000000e+00 : f32
    %77 = vector.broadcast %cst_31 : f32 to vector<16x128xf32>
    %78 = arith.maximumf %76, %77 : vector<16x128xf32>
    %c496_32 = arith.constant 496 : index
    %c128 = arith.constant 128 : index
    %79 = vector.load %arg1[%c496_32, %c128] : memref<752x256xbf16, #tpu.memory_space<vmem>>, vector<128x128xbf16>
    %80 = arith.truncf %78 : vector<16x128xf32> to vector<16x128xbf16>
    %cst_33 = arith.constant dense<0.000000e+00> : vector<16x128xf32>
    %81 = tpu.matmul %80, %79, %cst_33 {dimension_numbers = #tpu.dot_dimension_numbers<[1], [0], [0], [1], [0, 0, 1, 1], [], []>} : vector<16x128xbf16>, vector<128x128xbf16>, vector<16x128xf32> -> vector<16x128xf32>
    %c12 = arith.constant 12 : index
    %c0_34 = arith.constant 0 : index
    %82 = vector.load %arg2[%c12, %c0_34] : memref<16x256xf32, #tpu.memory_space<vmem>>, vector<1x128xf32>
    %83 = vector.broadcast %82 : vector<1x128xf32> to vector<16x128xf32>
    %84 = arith.addf %81, %83 : vector<16x128xf32>
    %c0_35 = arith.constant 0 : index
    %c0_36 = arith.constant 0 : index
    %85 = vector.load %arg3[%c0_35, %c0_36] : memref<16x256xf32, #tpu.memory_space<vmem>>, vector<16x128xf32>
    tpu.vector_store %arg3[%c0_35, %c0_36], %84 {strides = array<i32>} : memref<16x256xf32, #tpu.memory_space<vmem>>, vector<16x128xf32>,
    %c624 = arith.constant 624 : index
    %c0_37 = arith.constant 0 : index
    %86 = vector.load %arg1[%c624, %c0_37] : memref<752x256xbf16, #tpu.memory_space<vmem>>, vector<128x128xbf16>
    %87 = arith.truncf %84 : vector<16x128xf32> to vector<16x128xbf16>
    %cst_38 = arith.constant dense<0.000000e+00> : vector<16x128xf32>
    %88 = tpu.matmul %87, %86, %cst_38 {dimension_numbers = #tpu.dot_dimension_numbers<[1], [0], [0], [1], [0, 0, 1, 1], [], []>} : vector<16x128xbf16>, vector<128x128xbf16>, vector<16x128xf32> -> vector<16x128xf32>
    %c3 = arith.constant 3 : index
    %c0_39 = arith.constant 0 : index
    %89 = vector.load %arg2[%c3, %c0_39] : memref<16x256xf32, #tpu.memory_space<vmem>>, vector<1x128xf32>
    %c9 = arith.constant 9 : index
    %c0_40 = arith.constant 0 : index
    %90 = vector.load %arg2[%c9, %c0_40] : memref<16x256xf32, #tpu.memory_space<vmem>>, vector<1x128xf32>
    %cst_41 = arith.constant dense<0.000000e+00> : vector<128xf32>
    %91 = vector.multi_reduction <add>, %88, %cst_41 [0] : vector<16x128xf32> to vector<128xf32>
    %92 = vector.shape_cast %91 : vector<128xf32> to vector<1x128xf32>
    %cst_42 = arith.constant 6.250000e-02 : f32
    %93 = vector.broadcast %cst_42 : f32 to vector<1x128xf32>
    %94 = arith.mulf %92, %93 : vector<1x128xf32>
    %95 = vector.broadcast %94 : vector<1x128xf32> to vector<16x128xf32>
    %96 = arith.subf %88, %95 : vector<16x128xf32>
    %97 = arith.mulf %96, %96 : vector<16x128xf32>
    %cst_43 = arith.constant dense<0.000000e+00> : vector<128xf32>
    %98 = vector.multi_reduction <add>, %97, %cst_43 [0] : vector<16x128xf32> to vector<128xf32>
    %99 = vector.shape_cast %98 : vector<128xf32> to vector<1x128xf32>
    %cst_44 = arith.constant 6.250000e-02 : f32
    %100 = vector.broadcast %cst_44 : f32 to vector<1x128xf32>
    %101 = arith.mulf %99, %100 : vector<1x128xf32>
    %cst_45 = arith.constant 9.99999974E-6 : f32
    %102 = vector.broadcast %cst_45 : f32 to vector<1x128xf32>
    %103 = arith.addf %101, %102 : vector<1x128xf32>
    %104 = math.rsqrt %103 : vector<1x128xf32>
    %105 = arith.mulf %89, %104 : vector<1x128xf32>
    %106 = vector.broadcast %105 : vector<1x128xf32> to vector<16x128xf32>
    %107 = arith.mulf %96, %106 : vector<16x128xf32>
    %108 = vector.broadcast %90 : vector<1x128xf32> to vector<16x128xf32>
    %109 = arith.addf %107, %108 : vector<16x128xf32>
    %cst_46 = arith.constant 0.000000e+00 : f32
    %110 = vector.broadcast %cst_46 : f32 to vector<16x128xf32>
    %111 = arith.maximumf %109, %110 : vector<16x128xf32>
    %c624_47 = arith.constant 624 : index
    %c128_48 = arith.constant 128 : index
    %112 = vector.load %arg1[%c624_47, %c128_48] : memref<752x256xbf16, #tpu.memory_space<vmem>>, vector<128x128xbf16>
    %113 = arith.truncf %111 : vector<16x128xf32> to vector<16x128xbf16>
    %cst_49 = arith.constant dense<0.000000e+00> : vector<16x128xf32>
    %114 = tpu.matmul %113, %112, %cst_49 {dimension_numbers = #tpu.dot_dimension_numbers<[1], [0], [0], [1], [0, 0, 1, 1], [], []>} : vector<16x128xbf16>, vector<128x128xbf16>, vector<16x128xf32> -> vector<16x128xf32>
    %c4 = arith.constant 4 : index
    %c0_50 = arith.constant 0 : index
    %115 = vector.load %arg2[%c4, %c0_50] : memref<16x256xf32, #tpu.memory_space<vmem>>, vector<1x128xf32>
    %c10 = arith.constant 10 : index
    %c0_51 = arith.constant 0 : index
    %116 = vector.load %arg2[%c10, %c0_51] : memref<16x256xf32, #tpu.memory_space<vmem>>, vector<1x128xf32>
    %cst_52 = arith.constant dense<0.000000e+00> : vector<128xf32>
    %117 = vector.multi_reduction <add>, %114, %cst_52 [0] : vector<16x128xf32> to vector<128xf32>
    %118 = vector.shape_cast %117 : vector<128xf32> to vector<1x128xf32>
    %cst_53 = arith.constant 6.250000e-02 : f32
    %119 = vector.broadcast %cst_53 : f32 to vector<1x128xf32>
    %120 = arith.mulf %118, %119 : vector<1x128xf32>
    %121 = vector.broadcast %120 : vector<1x128xf32> to vector<16x128xf32>
    %122 = arith.subf %114, %121 : vector<16x128xf32>
    %123 = arith.mulf %122, %122 : vector<16x128xf32>
    %cst_54 = arith.constant dense<0.000000e+00> : vector<128xf32>
    %124 = vector.multi_reduction <add>, %123, %cst_54 [0] : vector<16x128xf32> to vector<128xf32>
    %125 = vector.shape_cast %124 : vector<128xf32> to vector<1x128xf32>
    %cst_55 = arith.constant 6.250000e-02 : f32
    %126 = vector.broadcast %cst_55 : f32 to vector<1x128xf32>
    %127 = arith.mulf %125, %126 : vector<1x128xf32>
    %cst_56 = arith.constant 9.99999974E-6 : f32
    %128 = vector.broadcast %cst_56 : f32 to vector<1x128xf32>
    %129 = arith.addf %127, %128 : vector<1x128xf32>
    %130 = math.rsqrt %129 : vector<1x128xf32>
    %131 = arith.mulf %115, %130 : vector<1x128xf32>
    %132 = vector.broadcast %131 : vector<1x128xf32> to vector<16x128xf32>
    %133 = arith.mulf %122, %132 : vector<16x128xf32>
    %134 = vector.broadcast %116 : vector<1x128xf32> to vector<16x128xf32>
    %135 = arith.addf %133, %134 : vector<16x128xf32>
    %cst_57 = arith.constant 0.000000e+00 : f32
    %136 = vector.broadcast %cst_57 : f32 to vector<16x128xf32>
    %137 = arith.maximumf %135, %136 : vector<16x128xf32>
    %c112 = arith.constant 112 : index
    %c0_58 = arith.constant 0 : index
    %138 = vector.load %arg1[%c112, %c0_58] : memref<752x256xbf16, #tpu.memory_space<vmem>>, vector<128x256xbf16>
    %139 = arith.truncf %137 : vector<16x128xf32> to vector<16x128xbf16>
    %cst_59 = arith.constant dense<0.000000e+00> : vector<16x256xf32>
    %140 = tpu.matmul %139, %138, %cst_59 {dimension_numbers = #tpu.dot_dimension_numbers<[1], [0], [0], [1], [0, 0, 1, 1], [], []>} : vector<16x128xbf16>, vector<128x256xbf16>, vector<16x256xf32> -> vector<16x256xf32>
    %c5 = arith.constant 5 : index
    %c0_60 = arith.constant 0 : index
    %141 = vector.load %arg2[%c5, %c0_60] : memref<16x256xf32, #tpu.memory_space<vmem>>, vector<1x256xf32>
    %c11 = arith.constant 11 : index
    %c0_61 = arith.constant 0 : index
    %142 = vector.load %arg2[%c11, %c0_61] : memref<16x256xf32, #tpu.memory_space<vmem>>, vector<1x256xf32>
    %cst_62 = arith.constant dense<0.000000e+00> : vector<256xf32>
    %143 = vector.multi_reduction <add>, %140, %cst_62 [0] : vector<16x256xf32> to vector<256xf32>
    %144 = vector.shape_cast %143 : vector<256xf32> to vector<1x256xf32>
    %cst_63 = arith.constant 6.250000e-02 : f32
    %145 = vector.broadcast %cst_63 : f32 to vector<1x256xf32>
    %146 = arith.mulf %144, %145 : vector<1x256xf32>
    %147 = vector.broadcast %146 : vector<1x256xf32> to vector<16x256xf32>
    %148 = arith.subf %140, %147 : vector<16x256xf32>
    %149 = arith.mulf %148, %148 : vector<16x256xf32>
    %cst_64 = arith.constant dense<0.000000e+00> : vector<256xf32>
    %150 = vector.multi_reduction <add>, %149, %cst_64 [0] : vector<16x256xf32> to vector<256xf32>
    %151 = vector.shape_cast %150 : vector<256xf32> to vector<1x256xf32>
    %cst_65 = arith.constant 6.250000e-02 : f32
    %152 = vector.broadcast %cst_65 : f32 to vector<1x256xf32>
    %153 = arith.mulf %151, %152 : vector<1x256xf32>
    %cst_66 = arith.constant 9.99999974E-6 : f32
    %154 = vector.broadcast %cst_66 : f32 to vector<1x256xf32>
    %155 = arith.addf %153, %154 : vector<1x256xf32>
    %156 = math.rsqrt %155 : vector<1x256xf32>
    %157 = arith.mulf %141, %156 : vector<1x256xf32>
    %158 = vector.broadcast %157 : vector<1x256xf32> to vector<16x256xf32>
    %159 = arith.mulf %148, %158 : vector<16x256xf32>
    %160 = vector.broadcast %142 : vector<1x256xf32> to vector<16x256xf32>
    %161 = arith.addf %159, %160 : vector<16x256xf32>
    %cst_67 = arith.constant 0.000000e+00 : f32
    %162 = vector.broadcast %cst_67 : f32 to vector<16x256xf32>
    %163 = arith.maximumf %161, %162 : vector<16x256xf32>
    %c240_68 = arith.constant 240 : index
    %c128_69 = arith.constant 128 : index
    %164 = vector.load %arg1[%c240_68, %c128_69] : memref<752x256xbf16, #tpu.memory_space<vmem>>, vector<256x128xbf16>
    %165 = arith.truncf %163 : vector<16x256xf32> to vector<16x256xbf16>
    %cst_70 = arith.constant dense<0.000000e+00> : vector<16x128xf32>
    %166 = tpu.matmul %165, %164, %cst_70 {dimension_numbers = #tpu.dot_dimension_numbers<[1], [0], [0], [1], [0, 0, 1, 1], [], []>} : vector<16x256xbf16>, vector<256x128xbf16>, vector<16x128xf32> -> vector<16x128xf32>
    %c13 = arith.constant 13 : index
    %c0_71 = arith.constant 0 : index
    %167 = vector.load %arg2[%c13, %c0_71] : memref<16x256xf32, #tpu.memory_space<vmem>>, vector<1x128xf32>
    %168 = vector.broadcast %167 : vector<1x128xf32> to vector<16x128xf32>
    %169 = arith.addf %166, %168 : vector<16x128xf32>
    %c0_72 = arith.constant 0 : index
    %c128_73 = arith.constant 128 : index
    %170 = vector.load %arg3[%c0_72, %c128_73] : memref<16x256xf32, #tpu.memory_space<vmem>>, vector<16x128xf32>
    tpu.vector_store %arg3[%c0_72, %c128_73], %169 {strides = array<i32>} : memref<16x256xf32, #tpu.memory_space<vmem>>, vector<16x128xf32>,
    return
  }
}

</mosaic_0001>

<llo_original>
// kernel: tpu_custom_call.1
$region0: #{tpu_custom_call.1}
  #allocation0 [shape = 'u32[]', space=smem, size = 0x4, offset = 0x4, fixed_abs, tag = 'smem constant byte address 0x4 - core index']
  #allocation1 [shape = 'u32[144,128]{1,0:T(1,128)}', space=vmem, size = 0x12000, scoped, tag = 'internal scratch']
  %s0 = inlined_call_operand.hbm [shape: f32[16,112], index: 0, kind: input, shape index: {}]
  %s1 = inlined_call_operand.hbm [shape: bf16[752,256], index: 1, kind: input, shape index: {}]
  %s2 = inlined_call_operand.hbm [shape: f32[16,256], index: 2, kind: input, shape index: {}]
  %s3 = inlined_call_operand.hbm [shape: f32[16,256], index: 3, kind: output, shape index: {}]
  %s4 = sld [smem:[#allocation0]]
  $region34: #{tpu_custom_call.1} parent=0
    _
  %s6 = ssub.s32 1, %s4
  %s7 = scalar_select 0, %s6, %s4
  $region1: #{tpu_custom_call.1} parent=0
    #allocation2 [shape = 'u8[8192]{0}', space=vmem, size = 0x2000, scoped, tag = 'input window, operand 0, single buffered']
    #allocation3 [shape = 's32[1]{0}', space=sflag, size = 0x4, scoped, tag = 'scoped memory for tpu_custom_call.1']
    #allocation4 [shape = 's32[1]{0}', space=sflag, size = 0x4, scoped, tag = 'scoped memory for tpu_custom_call.1']
    #allocation5 [shape = 'u8[385024]{0}', space=vmem, size = 0x5e000, scoped, tag = 'input window, operand 1, single buffered']
    #allocation6 [shape = 's32[1]{0}', space=sflag, size = 0x4, scoped, tag = 'scoped memory for tpu_custom_call.1']
    #allocation7 [shape = 'u8[16384]{0}', space=vmem, size = 0x4000, scoped, tag = 'input window, operand 2, single buffered']
    #allocation8 [shape = 'u8[16384]{0}', space=vmem, size = 0x4000, scoped, tag = 'output window, operand 0, single buffered']
    %8 = vsyncpa [#allocation3], 0
    %9 = vsyncpa [#allocation6], 0
    %10 = vsyncpa [#allocation4], 0
    // Predicated region
    $region2: #{tpu_custom_call.1} parent=1 // pred_check
      _
    $region3: #{tpu_custom_call.1} parent=1 // pred_check_branch
      %12 = sbr.rel (0) target = $region5
    $region4: #{tpu_custom_call.1} parent=1 // pred_region
      %s14 = ssub.s32 256, 256
      %15 = vsyncadd [#allocation3], %s14
      %s16 = sshll.u32 [#allocation2], 4
      %s17 = int_to_ptr.vmem [resolvable:$true] %s16
      %22 = dma.hbm_to_vmem [thread:$0]  %s0, 256, %s17, [#allocation3], 128, 128, 8
    $region5: #{tpu_custom_call.1} parent=1 // pred_fallthru
      _
    // Predicated region
    $region6: #{tpu_custom_call.1} parent=1 // pred_check
      _
    $region7: #{tpu_custom_call.1} parent=1 // pred_check_branch
      %24 = sbr.rel (0) target = $region9
    $region8: #{tpu_custom_call.1} parent=1 // pred_region
      %s26 = ssub.s32 12032, 12032
      %27 = vsyncadd [#allocation6], %s26
      %s28 = sshll.u32 [#allocation5], 4
      %s29 = int_to_ptr.vmem [resolvable:$true] %s28
      %34 = dma.hbm_to_vmem [thread:$0]  %s1, 12032, %s29, [#allocation6], 128, 128, 8
    $region9: #{tpu_custom_call.1} parent=1 // pred_fallthru
      _
    // Predicated region
    $region10: #{tpu_custom_call.1} parent=1 // pred_check
      _
    $region11: #{tpu_custom_call.1} parent=1 // pred_check_branch
      %36 = sbr.rel (0) target = $region13
    $region12: #{tpu_custom_call.1} parent=1 // pred_region
      %s38 = ssub.s32 512, 512
      %39 = vsyncadd [#allocation6], %s38
      %s40 = sshll.u32 [#allocation7], 4
      %s41 = int_to_ptr.vmem [resolvable:$true] %s40
      %46 = dma.hbm_to_vmem [thread:$0]  %s2, 512, %s41, [#allocation6], 256, 256, 16
    $region13: #{tpu_custom_call.1} parent=1 // pred_fallthru
      _
    // Predicated region
    $region14: #{tpu_custom_call.1} parent=1 // pred_check
      _
    $region15: #{tpu_custom_call.1} parent=1 // pred_check_branch
      %48 = sbr.rel (0) target = $region17
    $region16: #{tpu_custom_call.1} parent=1 // pred_region
      %49 = dma.done [#allocation3], 256
    $region17: #{tpu_custom_call.1} parent=1 // pred_fallthru
      _
    // Predicated region
    $region18: #{tpu_custom_call.1} parent=1 // pred_check
      _
    $region19: #{tpu_custom_call.1} parent=1 // pred_check_branch
      %51 = sbr.rel (0) target = $region21
    $region20: #{tpu_custom_call.1} parent=1 // pred_region
      %52 = dma.done [#allocation6], 12032
    $region21: #{tpu_custom_call.1} parent=1 // pred_fallthru
      _
    // Predicated region
    $region22: #{tpu_custom_call.1} parent=1 // pred_check
      _
    $region23: #{tpu_custom_call.1} parent=1 // pred_check_branch
      %54 = sbr.rel (0) target = $region25
    $region24: #{tpu_custom_call.1} parent=1 // pred_region
      %55 = dma.done [#allocation6], 512
    $region25: #{tpu_custom_call.1} parent=1 // pred_fallthru
      _
    %v57 = vld [vmem:[#allocation2] sm:$0xff]
    %v58 = vld [vmem:[#allocation2 + $0x8] sm:$0xff]
    %v59 = vld [vmem:[#allocation5] sm:$0xff]
    %v60 = vld [vmem:[#allocation5 + $0x8] sm:$0xff]
    %v61 = vld [vmem:[#allocation5 + $0x10] sm:$0xff]
    %v62 = vld [vmem:[#allocation5 + $0x18] sm:$0xff]
    %v63 = vld [vmem:[#allocation5 + $0x20] sm:$0xff]
    %v64 = vld [vmem:[#allocation5 + $0x28] sm:$0xff]
    %v65 = vld [vmem:[#allocation5 + $0x30] sm:$0xff]
    %v66 = vld [vmem:[#allocation5 + $0x38] sm:$0xff]
    %v67 = vld [vmem:[#allocation5 + $0x40] sm:$0xff]
    %v68 = vld [vmem:[#allocation5 + $0x48] sm:$0xff]
    %v69 = vld [vmem:[#allocation5 + $0x50] sm:$0xff]
    %v70 = vld [vmem:[#allocation5 + $0x58] sm:$0xff]
    %v71 = vld [vmem:[#allocation5 + $0x60] sm:$0xff]
    %v72 = vld [vmem:[#allocation5 + $0x68] sm:$0xff]
    %v73 = vpack.c.bf16 %v58, %v57
    %v88 = vunpack.c.l.b16 %v59
    %v89 = vunpack.c.h.b16 %v59
    %v90 = vunpack.c.l.b16 %v60
    %v91 = vunpack.c.h.b16 %v60
    %v92 = vunpack.c.l.b16 %v61
    %v93 = vunpack.c.h.b16 %v61
    %v94 = vunpack.c.l.b16 %v62
    %v95 = vunpack.c.h.b16 %v62
    %v96 = vunpack.c.l.b16 %v63
    %v97 = vunpack.c.h.b16 %v63
    %v98 = vunpack.c.l.b16 %v64
    %v99 = vunpack.c.h.b16 %v64
    %v100 = vunpack.c.l.b16 %v65
    %v101 = vunpack.c.h.b16 %v65
    %v102 = vunpack.c.l.b16 %v66
    %v103 = vunpack.c.h.b16 %v66
    %v104 = vunpack.c.l.b16 %v67
    %v105 = vunpack.c.h.b16 %v67
    %v106 = vunpack.c.l.b16 %v68
    %v107 = vunpack.c.h.b16 %v68
    %v108 = vunpack.c.l.b16 %v69
    %v109 = vunpack.c.h.b16 %v69
    %v110 = vunpack.c.l.b16 %v70
    %v111 = vunpack.c.h.b16 %v70
    %v112 = vunpack.c.l.b16 %v71
    %v113 = vunpack.c.h.b16 %v71
    %v114 = vunpack.c.l.b16 %v72
    %v115 = vunpack.c.h.b16 %v72
    %v116 = vpack.c.b16 %v90, %v88
    %v117 = vpack.c.b16 %v91, %v89
    %v118 = vpack.c.b16 %v94, %v92
    %v119 = vpack.c.b16 %v95, %v93
    %v120 = vpack.c.b16 %v98, %v96
    %v121 = vpack.c.b16 %v99, %v97
    %v122 = vpack.c.b16 %v102, %v100
    %v123 = vpack.c.b16 %v103, %v101
    %v124 = vpack.c.b16 %v106, %v104
    %v125 = vpack.c.b16 %v107, %v105
    %v126 = vpack.c.b16 %v110, %v108
    %v127 = vpack.c.b16 %v111, %v109
    %v128 = vpack.c.b16 %v114, %v112
    %v129 = vpack.c.b16 %v115, %v113
    %vm144 = vcmask 916480
    %v146 = vsel %vm144, %v73, 0
    %148 = vmatprep.subr.bf16.mxu0 0
    %149 = vmatpush1.bf16.msra.mxu0 0
    %150 = vmatprep.subr.bf16.mxu0 %v129
    %151 = vmatpush1.bf16.msra.mxu0 %v128
    %152 = vmatprep.subr.bf16.mxu0 %v127
    %153 = vmatpush1.bf16.msra.mxu0 %v126
    %154 = vmatprep.subr.bf16.mxu0 %v125
    %155 = vmatpush1.bf16.msra.mxu0 %v124
    %156 = vmatprep.subr.bf16.mxu0 %v123
    %157 = vmatpush1.bf16.msra.mxu0 %v122
    %158 = vmatprep.subr.bf16.mxu0 %v121
    %159 = vmatpush1.bf16.msra.mxu0 %v120
    %160 = vmatprep.subr.bf16.mxu0 %v119
    %161 = vmatpush1.bf16.msra.mxu0 %v118
    %162 = vmatprep.subr.bf16.mxu0 %v117
    %163 = vmatpush1.bf16.msra.mxu0 %v116
    %164 = vmatprep.subr.bf16.mxu0 0
    %165 = vmatpush2.bf16.msra.mxu0 0
    %166 = vmatprep.subr.bf16.mxu0 0
    %167 = vmatpush2.bf16.msra.mxu0 0
    %168 = vmatprep.subr.bf16.mxu0 0
    %169 = vmatpush2.bf16.msra.mxu0 0
    %170 = vmatprep.subr.bf16.mxu0 0
    %171 = vmatpush2.bf16.msra.mxu0 0
    %172 = vmatprep.subr.bf16.mxu0 0
    %173 = vmatpush2.bf16.msra.mxu0 0
    %174 = vmatprep.subr.bf16.mxu0 0
    %175 = vmatpush2.bf16.msra.mxu0 0
    %176 = vmatprep.subr.bf16.mxu0 0
    %177 = vmatpush2.bf16.msra.mxu0 0
    %178 = vmatprep.subr.bf16.mxu0 0
    %179 = vmatpush2.bf16.msra.mxu0 0
    %180 = vmatprep.mubr.bf16.mxu0 0
    %181 = vmatmul.mubr.bf16.gmra.mxu0 %v146
    %v182 = vpop.f32.mrf.mxu0
    %v183 = vadd.f32 0.0, %v182
    %v184 = vpop.f32.mrf.mxu0
    %v185 = vadd.f32 0.0, %v184
    %v186 = vpop.f32.mrf.mxu0
    %v187 = vadd.f32 0.0, %v186
    %v188 = vpop.f32.mrf.mxu0
    %v189 = vadd.f32 0.0, %v188
    %190 = vdwg.mxu0
    %v191 = vld [vmem:[#allocation7] ss:$8 sm:$0x3]
    %s192 = scalar_lea.vmem [#allocation7], 6
    %v193 = vld [vmem:[%s192] ss:$8 sm:$0x3]
    %v194 = vadd.f32 %v183, %v187
    %v195 = vrot.slane %v194, 4
    %v196 = vadd.f32 %v194, %v195
    %v197 = vrot.slane %v196, 2
    %v198 = vadd.f32 %v196, %v197
    %v199 = vrot.slane %v198, 1
    %v200 = vadd.f32 %v198, %v199
    %v201 = vadd.f32 %v185, %v189
    %v202 = vrot.slane %v201, 4
    %v203 = vadd.f32 %v201, %v202
    %v204 = vrot.slane %v203, 2
    %v205 = vadd.f32 %v203, %v204
    %v206 = vrot.slane %v205, 1
    %v207 = vadd.f32 %v205, %v206
    %v208 = vmul.f32 %v200, 0.0625
    %v209 = vmul.f32 %v207, 0.0625
    %v210 = vsub.f32 %v183, %v208
    %v211 = vsub.f32 %v185, %v209
    %v212 = vsub.f32 %v187, %v208
    %v213 = vsub.f32 %v189, %v209
    %v214 = vmul.f32 %v210, %v210
    %v215 = vmul.f32 %v211, %v211
    %v216 = vmul.f32 %v212, %v212
    %v217 = vmul.f32 %v213, %v213
    %v218 = vadd.f32 %v214, %v216
    %v219 = vrot.slane %v218, 4
    %v220 = vadd.f32 %v218, %v219
    %v221 = vrot.slane %v220, 2
    %v222 = vadd.f32 %v220, %v221
    %v223 = vrot.slane %v222, 1
    %v224 = vadd.f32 %v222, %v223
    %v225 = vadd.f32 %v215, %v217
    %v226 = vrot.slane %v225, 4
    %v227 = vadd.f32 %v225, %v226
    %v228 = vrot.slane %v227, 2
    %v229 = vadd.f32 %v227, %v228
    %v230 = vrot.slane %v229, 1
    %v231 = vadd.f32 %v229, %v230
    %v232 = vmul.f32 %v224, 0.0625
    %v233 = vmul.f32 %v231, 0.0625
    %v234 = vadd.f32 %v232, 1e-05
    %v235 = vadd.f32 %v233, 1e-05
    %v236 = vrsqrt.pop %v234
    %v237 = vrsqrt.pop %v235
    %v240 = vcombine.low %v236, %v237
    %v242 = vunpack.c.l.s4 1966171168
    %v243 = vunpack.c.0.s8 %v242
    %v244 = vlaneseq
    %v245 = vshrl.u32 %v244, 7
    %v246 = vsub.s32 %v243, %v245
    %v247 = vrot.slane %v240, %v246
    %v249 = vunpack.c.l.s4 1966171168
    %v250 = vunpack.c.0.s8 %v249
    %v251 = vlaneseq
    %v252 = vshrl.u32 %v251, 7
    %v253 = vsub.s32 %v250, %v252
    %v254 = vrot.slane %v247, %v253
    %v256 = vmul.f32 %v191, %v254
    %v258 = vlaneseq
    %v259 = vshrl.u32 %v258, 7
    %v260 = vsub.s32 0, %v259
    %v261 = vrot.slane %v256, %v260
    %v262 = vlaneseq
    %v263 = vshrl.u32 %v262, 7
    %v264 = vsub.s32 1, %v263
    %v265 = vrot.slane %v256, %v264
    %v268 = vmul.f32 %v210, %v261
    %v269 = vmul.f32 %v211, %v265
    %v270 = vmul.f32 %v212, %v261
    %v271 = vmul.f32 %v213, %v265
    %v273 = vlaneseq
    %v274 = vshrl.u32 %v273, 7
    %v275 = vsub.s32 0, %v274
    %v276 = vrot.slane %v193, %v275
    %v277 = vlaneseq
    %v278 = vshrl.u32 %v277, 7
    %v279 = vsub.s32 1, %v278
    %v280 = vrot.slane %v193, %v279
    %v283 = vadd.f32 %v268, %v276
    %v284 = vadd.f32 %v269, %v280
    %v285 = vadd.f32 %v270, %v276
    %v286 = vadd.f32 %v271, %v280
    %v287 = vmax.f32 %v283, 0.0
    %v288 = vmax.f32 %v284, 0.0
    %v289 = vmax.f32 %v285, 0.0
    %v290 = vmax.f32 %v286, 0.0
    %v291 = vld [vmem:[#allocation5 + $0xf0] sm:$0xf]
    %v292 = vld [vmem:[#allocation5 + $0xf8] sm:$0xf]
    %v293 = vld [vmem:[#allocation5 + $0x100] sm:$0xf]
    %v294 = vld [vmem:[#allocation5 + $0x108] sm:$0xf]
    %v295 = vld [vmem:[#allocation5 + $0x110] sm:$0xf]
    %v296 = vld [vmem:[#allocation5 + $0x118] sm:$0xf]
    %v297 = vld [vmem:[#allocation5 + $0x120] sm:$0xf]
    %v298 = vld [vmem:[#allocation5 + $0x128] sm:$0xf]
    %v299 = vld [vmem:[#allocation5 + $0x130] sm:$0xf]
    %v300 = vld [vmem:[#allocation5 + $0x138] sm:$0xf]
    %v301 = vld [vmem:[#allocation5 + $0x140] sm:$0xf]
    %v302 = vld [vmem:[#allocation5 + $0x148] sm:$0xf]
    %v303 = vld [vmem:[#allocation5 + $0x150] sm:$0xf]
    %v304 = vld [vmem:[#allocation5 + $0x158] sm:$0xf]
    %v305 = vld [vmem:[#allocation5 + $0x160] sm:$0xf]
    %v306 = vld [vmem:[#allocation5 + $0x168] sm:$0xf]
    %v307 = vld [vmem:[#allocation5 + $0x170] sm:$0xf]
    %v308 = vld [vmem:[#allocation5 + $0x178] sm:$0xf]
    %v309 = vld [vmem:[#allocation5 + $0x180] sm:$0xf]
    %v310 = vld [vmem:[#allocation5 + $0x188] sm:$0xf]
    %v311 = vld [vmem:[#allocation5 + $0x190] sm:$0xf]
    %v312 = vld [vmem:[#allocation5 + $0x198] sm:$0xf]
    %v313 = vld [vmem:[#allocation5 + $0x1a0] sm:$0xf]
    %v314 = vld [vmem:[#allocation5 + $0x1a8] sm:$0xf]
    %v315 = vld [vmem:[#allocation5 + $0x1b0] sm:$0xf]
    %v316 = vld [vmem:[#allocation5 + $0x1b8] sm:$0xf]
    %v317 = vld [vmem:[#allocation5 + $0x1c0] sm:$0xf]
    %v318 = vld [vmem:[#allocation5 + $0x1c8] sm:$0xf]
    %v319 = vld [vmem:[#allocation5 + $0x1d0] sm:$0xf]
    %v320 = vld [vmem:[#allocation5 + $0x1d8] sm:$0xf]
    %v321 = vld [vmem:[#allocation5 + $0x1e0] sm:$0xf]
    %v322 = vld [vmem:[#allocation5 + $0x1e8] sm:$0xf]
    %v323 = vpack.c.bf16 %v289, %v287
    %v324 = vpack.c.bf16 %v290, %v288
    %v357 = vunpack.c.l.b16 %v291
    %v358 = vunpack.c.l.b16 %v292
    %v359 = vunpack.c.l.b16 %v293
    %v360 = vunpack.c.l.b16 %v294
    %v361 = vunpack.c.l.b16 %v295
    %v362 = vunpack.c.l.b16 %v296
    %v363 = vunpack.c.l.b16 %v297
    %v364 = vunpack.c.l.b16 %v298
    %v365 = vunpack.c.l.b16 %v299
    %v366 = vunpack.c.l.b16 %v300
    %v367 = vunpack.c.l.b16 %v301
    %v368 = vunpack.c.l.b16 %v302
    %v369 = vunpack.c.l.b16 %v303
    %v370 = vunpack.c.l.b16 %v304
    %v371 = vunpack.c.l.b16 %v305
    %v372 = vunpack.c.l.b16 %v306
    %v373 = vunpack.c.l.b16 %v307
    %v374 = vunpack.c.l.b16 %v308
    %v375 = vunpack.c.l.b16 %v309
    %v376 = vunpack.c.l.b16 %v310
    %v377 = vunpack.c.l.b16 %v311
    %v378 = vunpack.c.l.b16 %v312
    %v379 = vunpack.c.l.b16 %v313
    %v380 = vunpack.c.l.b16 %v314
    %v381 = vunpack.c.l.b16 %v315
    %v382 = vunpack.c.l.b16 %v316
    %v383 = vunpack.c.l.b16 %v317
    %v384 = vunpack.c.l.b16 %v318
    %v385 = vunpack.c.l.b16 %v319
    %v386 = vunpack.c.l.b16 %v320
    %v387 = vunpack.c.l.b16 %v321
    %v388 = vunpack.c.l.b16 %v322
    %v389 = vpack.c.b16 %v358, %v357
    %v390 = vpack.c.b16 %v360, %v359
    %v391 = vpack.c.b16 %v362, %v361
    %v392 = vpack.c.b16 %v364, %v363
    %v393 = vpack.c.b16 %v366, %v365
    %v394 = vpack.c.b16 %v368, %v367
    %v395 = vpack.c.b16 %v370, %v369
    %v396 = vpack.c.b16 %v372, %v371
    %v397 = vpack.c.b16 %v374, %v373
    %v398 = vpack.c.b16 %v376, %v375
    %v399 = vpack.c.b16 %v378, %v377
    %v400 = vpack.c.b16 %v380, %v379
    %v401 = vpack.c.b16 %v382, %v381
    %v402 = vpack.c.b16 %v384, %v383
    %v403 = vpack.c.b16 %v386, %v385
    %v404 = vpack.c.b16 %v388, %v387
    %421 = vmatprep.subr.bf16.mxu0 0
    %422 = vmatpush1.bf16.msra.mxu0 %v396
    %423 = vmatprep.subr.bf16.mxu0 0
    %424 = vmatpush1.bf16.msra.mxu0 %v395
    %425 = vmatprep.subr.bf16.mxu0 0
    %426 = vmatpush1.bf16.msra.mxu0 %v394
    %427 = vmatprep.subr.bf16.mxu0 0
    %428 = vmatpush1.bf16.msra.mxu0 %v393
    %429 = vmatprep.subr.bf16.mxu0 0
    %430 = vmatpush1.bf16.msra.mxu0 %v392
    %431 = vmatprep.subr.bf16.mxu0 0
    %432 = vmatpush1.bf16.msra.mxu0 %v391
    %433 = vmatprep.subr.bf16.mxu0 0
    %434 = vmatpush1.bf16.msra.mxu0 %v390
    %435 = vmatprep.subr.bf16.mxu0 0
    %436 = vmatpush1.bf16.msra.mxu0 %v389
    %437 = vmatprep.subr.bf16.mxu0 0
    %438 = vmatpush2.bf16.msra.mxu0 %v404
    %439 = vmatprep.subr.bf16.mxu0 0
    %440 = vmatpush2.bf16.msra.mxu0 %v403
    %441 = vmatprep.subr.bf16.mxu0 0
    %442 = vmatpush2.bf16.msra.mxu0 %v402
    %443 = vmatprep.subr.bf16.mxu0 0
    %444 = vmatpush2.bf16.msra.mxu0 %v401
    %445 = vmatprep.subr.bf16.mxu0 0
    %446 = vmatpush2.bf16.msra.mxu0 %v400
    %447 = vmatprep.subr.bf16.mxu0 0
    %448 = vmatpush2.bf16.msra.mxu0 %v399
    %449 = vmatprep.subr.bf16.mxu0 0
    %450 = vmatpush2.bf16.msra.mxu0 %v398
    %451 = vmatprep.subr.bf16.mxu0 0
    %452 = vmatpush2.bf16.msra.mxu0 %v397
    %453 = vmatprep.mubr.bf16.mxu0 %v324
    %454 = vmatmul.mubr.bf16.gmra.mxu0 %v323
    %v455 = vpop.f32.mrf.mxu0
    %v456 = vadd.f32 0.0, %v455
    %v457 = vpop.f32.mrf.mxu0
    %v458 = vpop.f32.mrf.mxu0
    %v459 = vadd.f32 0.0, %v458
    %v460 = vpop.f32.mrf.mxu0
    %461 = vdwg.mxu0
    %v462 = vld [vmem:[#allocation7 + $0x1] ss:$0 sm:$0xff]
    %v463 = vld [vmem:[#allocation7 + $0x7] ss:$0 sm:$0xff]
    %v464 = vadd.f32 %v456, %v459
    %v465 = vrot.slane %v464, 4
    %v466 = vadd.f32 %v464, %v465
    %v467 = vrot.slane %v466, 2
    %v468 = vadd.f32 %v466, %v467
    %v469 = vrot.slane %v468, 1
    %v470 = vadd.f32 %v468, %v469
    %v471 = vmul.f32 %v470, 0.0625
    %v472 = vsub.f32 %v456, %v471
    %v473 = vsub.f32 %v459, %v471
    %v474 = vmul.f32 %v472, %v472
    %v475 = vmul.f32 %v473, %v473
    %v476 = vadd.f32 %v474, %v475
    %v477 = vrot.slane %v476, 4
    %v478 = vadd.f32 %v476, %v477
    %v479 = vrot.slane %v478, 2
    %v480 = vadd.f32 %v478, %v479
    %v481 = vrot.slane %v480, 1
    %v482 = vadd.f32 %v480, %v481
    %v483 = vmul.f32 %v482, 0.0625
    %v484 = vadd.f32 %v483, 1e-05
    %v485 = vrsqrt.pop %v484
    %v486 = vmul.f32 %v462, %v485
    %v487 = vmul.f32 %v472, %v486
    %v488 = vmul.f32 %v473, %v486
    %v489 = vadd.f32 %v487, %v463
    %v490 = vadd.f32 %v488, %v463
    %v491 = vmax.f32 %v489, 0.0
    %v492 = vmax.f32 %v490, 0.0
    %v493 = vld [vmem:[#allocation5 + $0x1f0] sm:$0xf]
    %v494 = vld [vmem:[#allocation5 + $0x1f8] sm:$0xf]
    %v495 = vld [vmem:[#allocation5 + $0x200] sm:$0xf]
    %v496 = vld [vmem:[#allocation5 + $0x208] sm:$0xf]
    %v497 = vld [vmem:[#allocation5 + $0x210] sm:$0xf]
    %v498 = vld [vmem:[#allocation5 + $0x218] sm:$0xf]
    %v499 = vld [vmem:[#allocation5 + $0x220] sm:$0xf]
    %v500 = vld [vmem:[#allocation5 + $0x228] sm:$0xf]
    %v501 = vld [vmem:[#allocation5 + $0x230] sm:$0xf]
    %v502 = vld [vmem:[#allocation5 + $0x238] sm:$0xf]
    %v503 = vld [vmem:[#allocation5 + $0x240] sm:$0xf]
    %v504 = vld [vmem:[#allocation5 + $0x248] sm:$0xf]
    %v505 = vld [vmem:[#allocation5 + $0x250] sm:$0xf]
    %v506 = vld [vmem:[#allocation5 + $0x258] sm:$0xf]
    %v507 = vld [vmem:[#allocation5 + $0x260] sm:$0xf]
    %v508 = vld [vmem:[#allocation5 + $0x268] sm:$0xf]
    %v509 = vpack.c.bf16 %v492, %v491
    %v526 = vunpack.c.l.b16 %v493
    %v527 = vunpack.c.l.b16 %v494
    %v528 = vunpack.c.l.b16 %v495
    %v529 = vunpack.c.l.b16 %v496
    %v530 = vunpack.c.l.b16 %v497
    %v531 = vunpack.c.l.b16 %v498
    %v532 = vunpack.c.l.b16 %v499
    %v533 = vunpack.c.l.b16 %v500
    %v534 = vunpack.c.l.b16 %v501
    %v535 = vunpack.c.l.b16 %v502
    %v536 = vunpack.c.l.b16 %v503
    %v537 = vunpack.c.l.b16 %v504
    %v538 = vunpack.c.l.b16 %v505
    %v539 = vunpack.c.l.b16 %v506
    %v540 = vunpack.c.l.b16 %v507
    %v541 = vunpack.c.l.b16 %v508
    %v542 = vpack.c.b16 %v527, %v526
    %v543 = vpack.c.b16 %v529, %v528
    %v544 = vpack.c.b16 %v531, %v530
    %v545 = vpack.c.b16 %v533, %v532
    %v546 = vpack.c.b16 %v535, %v534
    %v547 = vpack.c.b16 %v537, %v536
    %v548 = vpack.c.b16 %v539, %v538
    %v549 = vpack.c.b16 %v541, %v540
    %558 = vmatprep.subr.bf16.mxu0 0
    %559 = vmatpush1.bf16.msra.mxu0 %v549
    %560 = vmatprep.subr.bf16.mxu0 0
    %561 = vmatpush1.bf16.msra.mxu0 %v548
    %562 = vmatprep.subr.bf16.mxu0 0
    %563 = vmatpush1.bf16.msra.mxu0 %v547
    %564 = vmatprep.subr.bf16.mxu0 0
    %565 = vmatpush1.bf16.msra.mxu0 %v546
    %566 = vmatprep.subr.bf16.mxu0 0
    %567 = vmatpush1.bf16.msra.mxu0 %v545
    %568 = vmatprep.subr.bf16.mxu0 0
    %569 = vmatpush1.bf16.msra.mxu0 %v544
    %570 = vmatprep.subr.bf16.mxu0 0
    %571 = vmatpush1.bf16.msra.mxu0 %v543
    %572 = vmatprep.subr.bf16.mxu0 0
    %573 = vmatpush1.bf16.msra.mxu0 %v542
    %574 = vmatprep.subr.bf16.mxu0 0
    %575 = vmatpush2.bf16.msra.mxu0 0
    %576 = vmatprep.subr.bf16.mxu0 0
    %577 = vmatpush2.bf16.msra.mxu0 0
    %578 = vmatprep.subr.bf16.mxu0 0
    %579 = vmatpush2.bf16.msra.mxu0 0
    %580 = vmatprep.subr.bf16.mxu0 0
    %581 = vmatpush2.bf16.msra.mxu0 0
    %582 = vmatprep.subr.bf16.mxu0 0
    %583 = vmatpush2.bf16.msra.mxu0 0
    %584 = vmatprep.subr.bf16.mxu0 0
    %585 = vmatpush2.bf16.msra.mxu0 0
    %586 = vmatprep.subr.bf16.mxu0 0
    %587 = vmatpush2.bf16.msra.mxu0 0
    %588 = vmatprep.subr.bf16.mxu0 0
    %589 = vmatpush2.bf16.msra.mxu0 0
    %590 = vmatprep.mubr.bf16.mxu0 0
    %591 = vmatmul.mubr.bf16.gmra.mxu0 %v509
    %v592 = vpop.f32.mrf.mxu0
    %v593 = vadd.f32 0.0, %v592
    %v594 = vpop.f32.mrf.mxu0
    %v595 = vpop.f32.mrf.mxu0
    %v596 = vadd.f32 0.0, %v595
    %v597 = vpop.f32.mrf.mxu0
    %598 = vdwg.mxu0
    %v599 = vld [vmem:[#allocation7 + $0x2] ss:$0 sm:$0xff]
    %v600 = vld [vmem:[#allocation7 + $0x10] ss:$0 sm:$0xff]
    %v601 = vadd.f32 %v593, %v596
    %v602 = vrot.slane %v601, 4
    %v603 = vadd.f32 %v601, %v602
    %v604 = vrot.slane %v603, 2
    %v605 = vadd.f32 %v603, %v604
    %v606 = vrot.slane %v605, 1
    %v607 = vadd.f32 %v605, %v606
    %v608 = vmul.f32 %v607, 0.0625
    %v609 = vsub.f32 %v593, %v608
    %v610 = vsub.f32 %v596, %v608
    %v611 = vmul.f32 %v609, %v609
    %v612 = vmul.f32 %v610, %v610
    %v613 = vadd.f32 %v611, %v612
    %v614 = vrot.slane %v613, 4
    %v615 = vadd.f32 %v613, %v614
    %v616 = vrot.slane %v615, 2
    %v617 = vadd.f32 %v615, %v616
    %v618 = vrot.slane %v617, 1
    %v619 = vadd.f32 %v617, %v618
    %v620 = vmul.f32 %v619, 0.0625
    %v621 = vadd.f32 %v620, 1e-05
    %v622 = vrsqrt.pop %v621
    %v623 = vmul.f32 %v599, %v622
    %v624 = vmul.f32 %v609, %v623
    %v625 = vmul.f32 %v610, %v623
    %v626 = vadd.f32 %v624, %v600
    %v627 = vadd.f32 %v625, %v600
    %v628 = vmax.f32 %v626, 0.0
    %v629 = vmax.f32 %v627, 0.0
    %v630 = vld [vmem:[#allocation5 + $0x1f4] sm:$0xf]
    %v631 = vld [vmem:[#allocation5 + $0x1fc] sm:$0xf]
    %v632 = vld [vmem:[#allocation5 + $0x204] sm:$0xf]
    %v633 = vld [vmem:[#allocation5 + $0x20c] sm:$0xf]
    %v634 = vld [vmem:[#allocation5 + $0x214] sm:$0xf]
    %v635 = vld [vmem:[#allocation5 + $0x21c] sm:$0xf]
    %v636 = vld [vmem:[#allocation5 + $0x224] sm:$0xf]
    %v637 = vld [vmem:[#allocation5 + $0x22c] sm:$0xf]
    %v638 = vld [vmem:[#allocation5 + $0x234] sm:$0xf]
    %v639 = vld [vmem:[#allocation5 + $0x23c] sm:$0xf]
    %v640 = vld [vmem:[#allocation5 + $0x244] sm:$0xf]
    %v641 = vld [vmem:[#allocation5 + $0x24c] sm:$0xf]
    %v642 = vld [vmem:[#allocation5 + $0x254] sm:$0xf]
    %v643 = vld [vmem:[#allocation5 + $0x25c] sm:$0xf]
    %v644 = vld [vmem:[#allocation5 + $0x264] sm:$0xf]
    %v645 = vld [vmem:[#allocation5 + $0x26c] sm:$0xf]
    %v646 = vpack.c.bf16 %v629, %v628
    %v647 = vld [vmem:[#allocation7 + $0x14] ss:$0 sm:$0xff]
    %v664 = vunpack.c.l.b16 %v630
    %v665 = vunpack.c.l.b16 %v631
    %v666 = vunpack.c.l.b16 %v632
    %v667 = vunpack.c.l.b16 %v633
    %v668 = vunpack.c.l.b16 %v634
    %v669 = vunpack.c.l.b16 %v635
    %v670 = vunpack.c.l.b16 %v636
    %v671 = vunpack.c.l.b16 %v637
    %v672 = vunpack.c.l.b16 %v638
    %v673 = vunpack.c.l.b16 %v639
    %v674 = vunpack.c.l.b16 %v640
    %v675 = vunpack.c.l.b16 %v641
    %v676 = vunpack.c.l.b16 %v642
    %v677 = vunpack.c.l.b16 %v643
    %v678 = vunpack.c.l.b16 %v644
    %v679 = vunpack.c.l.b16 %v645
    %v680 = vpack.c.b16 %v665, %v664
    %v681 = vpack.c.b16 %v667, %v666
    %v682 = vpack.c.b16 %v669, %v668
    %v683 = vpack.c.b16 %v671, %v670
    %v684 = vpack.c.b16 %v673, %v672
    %v685 = vpack.c.b16 %v675, %v674
    %v686 = vpack.c.b16 %v677, %v676
    %v687 = vpack.c.b16 %v679, %v678
    %696 = vmatprep.subr.bf16.mxu0 0
    %697 = vmatpush1.bf16.msra.mxu0 %v687
    %698 = vmatprep.subr.bf16.mxu0 0
    %699 = vmatpush1.bf16.msra.mxu0 %v686
    %700 = vmatprep.subr.bf16.mxu0 0
    %701 = vmatpush1.bf16.msra.mxu0 %v685
    %702 = vmatprep.subr.bf16.mxu0 0
    %703 = vmatpush1.bf16.msra.mxu0 %v684
    %704 = vmatprep.subr.bf16.mxu0 0
    %705 = vmatpush1.bf16.msra.mxu0 %v683
    %706 = vmatprep.subr.bf16.mxu0 0
    %707 = vmatpush1.bf16.msra.mxu0 %v682
    %708 = vmatprep.subr.bf16.mxu0 0
    %709 = vmatpush1.bf16.msra.mxu0 %v681
    %710 = vmatprep.subr.bf16.mxu0 0
    %711 = vmatpush1.bf16.msra.mxu0 %v680
    %712 = vmatprep.subr.bf16.mxu0 0
    %713 = vmatpush2.bf16.msra.mxu0 0
    %714 = vmatprep.subr.bf16.mxu0 0
    %715 = vmatpush2.bf16.msra.mxu0 0
    %716 = vmatprep.subr.bf16.mxu0 0
    %717 = vmatpush2.bf16.msra.mxu0 0
    %718 = vmatprep.subr.bf16.mxu0 0
    %719 = vmatpush2.bf16.msra.mxu0 0
    %720 = vmatprep.subr.bf16.mxu0 0
    %721 = vmatpush2.bf16.msra.mxu0 0
    %722 = vmatprep.subr.bf16.mxu0 0
    %723 = vmatpush2.bf16.msra.mxu0 0
    %724 = vmatprep.subr.bf16.mxu0 0
    %725 = vmatpush2.bf16.msra.mxu0 0
    %726 = vmatprep.subr.bf16.mxu0 0
    %727 = vmatpush2.bf16.msra.mxu0 0
    %728 = vmatprep.mubr.bf16.mxu0 0
    %729 = vmatmul.mubr.bf16.gmra.mxu0 %v646
    %v730 = vpop.f32.mrf.mxu0
    %v731 = vadd.f32 %v647, %v730
    %v732 = vpop.f32.mrf.mxu0
    %v733 = vpop.f32.mrf.mxu0
    %v734 = vadd.f32 %v647, %v733
    %v735 = vpop.f32.mrf.mxu0
    %736 = vdwg.mxu0
    %737 = vst [vmem:[#allocation8] sm:$0xff] %v731
    %738 = vst [vmem:[#allocation8 + $0x10] sm:$0xff] %v734
    %v739 = vld [vmem:[#allocation5 + $0x270] sm:$0xf]
    %v740 = vld [vmem:[#allocation5 + $0x278] sm:$0xf]
    %v741 = vld [vmem:[#allocation5 + $0x280] sm:$0xf]
    %v742 = vld [vmem:[#allocation5 + $0x288] sm:$0xf]
    %v743 = vld [vmem:[#allocation5 + $0x290] sm:$0xf]
    %v744 = vld [vmem:[#allocation5 + $0x298] sm:$0xf]
    %v745 = vld [vmem:[#allocation5 + $0x2a0] sm:$0xf]
    %v746 = vld [vmem:[#allocation5 + $0x2a8] sm:$0xf]
    %v747 = vld [vmem:[#allocation5 + $0x2b0] sm:$0xf]
    %v748 = vld [vmem:[#allocation5 + $0x2b8] sm:$0xf]
    %v749 = vld [vmem:[#allocation5 + $0x2c0] sm:$0xf]
    %v750 = vld [vmem:[#allocation5 + $0x2c8] sm:$0xf]
    %v751 = vld [vmem:[#allocation5 + $0x2d0] sm:$0xf]
    %v752 = vld [vmem:[#allocation5 + $0x2d8] sm:$0xf]
    %v753 = vld [vmem:[#allocation5 + $0x2e0] sm:$0xf]
    %v754 = vld [vmem:[#allocation5 + $0x2e8] sm:$0xf]
    %v755 = vpack.c.bf16 %v734, %v731
    %v772 = vunpack.c.l.b16 %v739
    %v773 = vunpack.c.l.b16 %v740
    %v774 = vunpack.c.l.b16 %v741
    %v775 = vunpack.c.l.b16 %v742
    %v776 = vunpack.c.l.b16 %v743
    %v777 = vunpack.c.l.b16 %v744
    %v778 = vunpack.c.l.b16 %v745
    %v779 = vunpack.c.l.b16 %v746
    %v780 = vunpack.c.l.b16 %v747
    %v781 = vunpack.c.l.b16 %v748
    %v782 = vunpack.c.l.b16 %v749
    %v783 = vunpack.c.l.b16 %v750
    %v784 = vunpack.c.l.b16 %v751
    %v785 = vunpack.c.l.b16 %v752
    %v786 = vunpack.c.l.b16 %v753
    %v787 = vunpack.c.l.b16 %v754
    %v788 = vpack.c.b16 %v773, %v772
    %v789 = vpack.c.b16 %v775, %v774
    %v790 = vpack.c.b16 %v777, %v776
    %v791 = vpack.c.b16 %v779, %v778
    %v792 = vpack.c.b16 %v781, %v780
    %v793 = vpack.c.b16 %v783, %v782
    %v794 = vpack.c.b16 %v785, %v784
    %v795 = vpack.c.b16 %v787, %v786
    %804 = vmatprep.subr.bf16.mxu0 0
    %805 = vmatpush1.bf16.msra.mxu0 %v795
    %806 = vmatprep.subr.bf16.mxu0 0
    %807 = vmatpush1.bf16.msra.mxu0 %v794
    %808 = vmatprep.subr.bf16.mxu0 0
    %809 = vmatpush1.bf16.msra.mxu0 %v793
    %810 = vmatprep.subr.bf16.mxu0 0
    %811 = vmatpush1.bf16.msra.mxu0 %v792
    %812 = vmatprep.subr.bf16.mxu0 0
    %813 = vmatpush1.bf16.msra.mxu0 %v791
    %814 = vmatprep.subr.bf16.mxu0 0
    %815 = vmatpush1.bf16.msra.mxu0 %v790
    %816 = vmatprep.subr.bf16.mxu0 0
    %817 = vmatpush1.bf16.msra.mxu0 %v789
    %818 = vmatprep.subr.bf16.mxu0 0
    %819 = vmatpush1.bf16.msra.mxu0 %v788
    %820 = vmatprep.subr.bf16.mxu0 0
    %821 = vmatpush2.bf16.msra.mxu0 0
    %822 = vmatprep.subr.bf16.mxu0 0
    %823 = vmatpush2.bf16.msra.mxu0 0
    %824 = vmatprep.subr.bf16.mxu0 0
    %825 = vmatpush2.bf16.msra.mxu0 0
    %826 = vmatprep.subr.bf16.mxu0 0
    %827 = vmatpush2.bf16.msra.mxu0 0
    %828 = vmatprep.subr.bf16.mxu0 0
    %829 = vmatpush2.bf16.msra.mxu0 0
    %830 = vmatprep.subr.bf16.mxu0 0
    %831 = vmatpush2.bf16.msra.mxu0 0
    %832 = vmatprep.subr.bf16.mxu0 0
    %833 = vmatpush2.bf16.msra.mxu0 0
    %834 = vmatprep.subr.bf16.mxu0 0
    %835 = vmatpush2.bf16.msra.mxu0 0
    %836 = vmatprep.mubr.bf16.mxu0 0
    %837 = vmatmul.mubr.bf16.gmra.mxu0 %v755
    %v838 = vpop.f32.mrf.mxu0
    %v839 = vadd.f32 0.0, %v838
    %v840 = vpop.f32.mrf.mxu0
    %v841 = vpop.f32.mrf.mxu0
    %v842 = vadd.f32 0.0, %v841
    %v843 = vpop.f32.mrf.mxu0
    %844 = vdwg.mxu0
    %v845 = vld [vmem:[#allocation7 + $0x3] ss:$0 sm:$0xff]
    %v846 = vld [vmem:[#allocation7 + $0x11] ss:$0 sm:$0xff]
    %v847 = vadd.f32 %v839, %v842
    %v848 = vrot.slane %v847, 4
    %v849 = vadd.f32 %v847, %v848
    %v850 = vrot.slane %v849, 2
    %v851 = vadd.f32 %v849, %v850
    %v852 = vrot.slane %v851, 1
    %v853 = vadd.f32 %v851, %v852
    %v854 = vmul.f32 %v853, 0.0625
    %v855 = vsub.f32 %v839, %v854
    %v856 = vsub.f32 %v842, %v854
    %v857 = vmul.f32 %v855, %v855
    %v858 = vmul.f32 %v856, %v856
    %v859 = vadd.f32 %v857, %v858
    %v860 = vrot.slane %v859, 4
    %v861 = vadd.f32 %v859, %v860
    %v862 = vrot.slane %v861, 2
    %v863 = vadd.f32 %v861, %v862
    %v864 = vrot.slane %v863, 1
    %v865 = vadd.f32 %v863, %v864
    %v866 = vmul.f32 %v865, 0.0625
    %v867 = vadd.f32 %v866, 1e-05
    %v868 = vrsqrt.pop %v867
    %v869 = vmul.f32 %v845, %v868
    %v870 = vmul.f32 %v855, %v869
    %v871 = vmul.f32 %v856, %v869
    %v872 = vadd.f32 %v870, %v846
    %v873 = vadd.f32 %v871, %v846
    %v874 = vmax.f32 %v872, 0.0
    %v875 = vmax.f32 %v873, 0.0
    %v876 = vld [vmem:[#allocation5 + $0x274] sm:$0xf]
    %v877 = vld [vmem:[#allocation5 + $0x27c] sm:$0xf]
    %v878 = vld [vmem:[#allocation5 + $0x284] sm:$0xf]
    %v879 = vld [vmem:[#allocation5 + $0x28c] sm:$0xf]
    %v880 = vld [vmem:[#allocation5 + $0x294] sm:$0xf]
    %v881 = vld [vmem:[#allocation5 + $0x29c] sm:$0xf]
    %v882 = vld [vmem:[#allocation5 + $0x2a4] sm:$0xf]
    %v883 = vld [vmem:[#allocation5 + $0x2ac] sm:$0xf]
    %v884 = vld [vmem:[#allocation5 + $0x2b4] sm:$0xf]
    %v885 = vld [vmem:[#allocation5 + $0x2bc] sm:$0xf]
    %v886 = vld [vmem:[#allocation5 + $0x2c4] sm:$0xf]
    %v887 = vld [vmem:[#allocation5 + $0x2cc] sm:$0xf]
    %v888 = vld [vmem:[#allocation5 + $0x2d4] sm:$0xf]
    %v889 = vld [vmem:[#allocation5 + $0x2dc] sm:$0xf]
    %v890 = vld [vmem:[#allocation5 + $0x2e4] sm:$0xf]
    %v891 = vld [vmem:[#allocation5 + $0x2ec] sm:$0xf]
    %v892 = vpack.c.bf16 %v875, %v874
    %v909 = vunpack.c.l.b16 %v876
    %v910 = vunpack.c.l.b16 %v877
    %v911 = vunpack.c.l.b16 %v878
    %v912 = vunpack.c.l.b16 %v879
    %v913 = vunpack.c.l.b16 %v880
    %v914 = vunpack.c.l.b16 %v881
    %v915 = vunpack.c.l.b16 %v882
    %v916 = vunpack.c.l.b16 %v883
    %v917 = vunpack.c.l.b16 %v884
    %v918 = vunpack.c.l.b16 %v885
    %v919 = vunpack.c.l.b16 %v886
    %v920 = vunpack.c.l.b16 %v887
    %v921 = vunpack.c.l.b16 %v888
    %v922 = vunpack.c.l.b16 %v889
    %v923 = vunpack.c.l.b16 %v890
    %v924 = vunpack.c.l.b16 %v891
    %v925 = vpack.c.b16 %v910, %v909
    %v926 = vpack.c.b16 %v912, %v911
    %v927 = vpack.c.b16 %v914, %v913
    %v928 = vpack.c.b16 %v916, %v915
    %v929 = vpack.c.b16 %v918, %v917
    %v930 = vpack.c.b16 %v920, %v919
    %v931 = vpack.c.b16 %v922, %v921
    %v932 = vpack.c.b16 %v924, %v923
    %941 = vmatprep.subr.bf16.mxu0 0
    %942 = vmatpush1.bf16.msra.mxu0 %v932
    %943 = vmatprep.subr.bf16.mxu0 0
    %944 = vmatpush1.bf16.msra.mxu0 %v931
    %945 = vmatprep.subr.bf16.mxu0 0
    %946 = vmatpush1.bf16.msra.mxu0 %v930
    %947 = vmatprep.subr.bf16.mxu0 0
    %948 = vmatpush1.bf16.msra.mxu0 %v929
    %949 = vmatprep.subr.bf16.mxu0 0
    %950 = vmatpush1.bf16.msra.mxu0 %v928
    %951 = vmatprep.subr.bf16.mxu0 0
    %952 = vmatpush1.bf16.msra.mxu0 %v927
    %953 = vmatprep.subr.bf16.mxu0 0
    %954 = vmatpush1.bf16.msra.mxu0 %v926
    %955 = vmatprep.subr.bf16.mxu0 0
    %956 = vmatpush1.bf16.msra.mxu0 %v925
    %957 = vmatprep.subr.bf16.mxu0 0
    %958 = vmatpush2.bf16.msra.mxu0 0
    %959 = vmatprep.subr.bf16.mxu0 0
    %960 = vmatpush2.bf16.msra.mxu0 0
    %961 = vmatprep.subr.bf16.mxu0 0
    %962 = vmatpush2.bf16.msra.mxu0 0
    %963 = vmatprep.subr.bf16.mxu0 0
    %964 = vmatpush2.bf16.msra.mxu0 0
    %965 = vmatprep.subr.bf16.mxu0 0
    %966 = vmatpush2.bf16.msra.mxu0 0
    %967 = vmatprep.subr.bf16.mxu0 0
    %968 = vmatpush2.bf16.msra.mxu0 0
    %969 = vmatprep.subr.bf16.mxu0 0
    %970 = vmatpush2.bf16.msra.mxu0 0
    %971 = vmatprep.subr.bf16.mxu0 0
    %972 = vmatpush2.bf16.msra.mxu0 0
    %973 = vmatprep.mubr.bf16.mxu0 0
    %974 = vmatmul.mubr.bf16.gmra.mxu0 %v892
    %v975 = vpop.f32.mrf.mxu0
    %v976 = vadd.f32 0.0, %v975
    %v977 = vpop.f32.mrf.mxu0
    %v978 = vpop.f32.mrf.mxu0
    %v979 = vadd.f32 0.0, %v978
    %v980 = vpop.f32.mrf.mxu0
    %981 = vdwg.mxu0
    %v982 = vld [vmem:[#allocation7 + $0x4] ss:$0 sm:$0xff]
    %v983 = vld [vmem:[#allocation7 + $0x12] ss:$0 sm:$0xff]
    %v984 = vadd.f32 %v976, %v979
    %v985 = vrot.slane %v984, 4
    %v986 = vadd.f32 %v984, %v985
    %v987 = vrot.slane %v986, 2
    %v988 = vadd.f32 %v986, %v987
    %v989 = vrot.slane %v988, 1
    %v990 = vadd.f32 %v988, %v989
    %v991 = vmul.f32 %v990, 0.0625
    %v992 = vsub.f32 %v976, %v991
    %v993 = vsub.f32 %v979, %v991
    %v994 = vmul.f32 %v992, %v992
    %v995 = vmul.f32 %v993, %v993
    %v996 = vadd.f32 %v994, %v995
    %v997 = vrot.slane %v996, 4
    %v998 = vadd.f32 %v996, %v997
    %v999 = vrot.slane %v998, 2
    %v1000 = vadd.f32 %v998, %v999
    %v1001 = vrot.slane %v1000, 1
    %v1002 = vadd.f32 %v1000, %v1001
    %v1003 = vmul.f32 %v1002, 0.0625
    %v1004 = vadd.f32 %v1003, 1e-05
    %v1005 = vrsqrt.pop %v1004
    %v1006 = vmul.f32 %v982, %v1005
    %v1007 = vmul.f32 %v992, %v1006
    %v1008 = vmul.f32 %v993, %v1006
    %v1009 = vadd.f32 %v1007, %v983
    %v1010 = vadd.f32 %v1008, %v983
    %v1011 = vmax.f32 %v1009, 0.0
    %v1012 = vmax.f32 %v1010, 0.0
    %v1013 = vld [vmem:[#allocation5 + $0x70] sm:$0xff]
    %v1014 = vld [vmem:[#allocation5 + $0x78] sm:$0xff]
    %v1015 = vld [vmem:[#allocation5 + $0x80] sm:$0xff]
    %v1016 = vld [vmem:[#allocation5 + $0x88] sm:$0xff]
    %v1017 = vld [vmem:[#allocation5 + $0x90] sm:$0xff]
    %v1018 = vld [vmem:[#allocation5 + $0x98] sm:$0xff]
    %v1019 = vld [vmem:[#allocation5 + $0xa0] sm:$0xff]
    %v1020 = vld [vmem:[#allocation5 + $0xa8] sm:$0xff]
    %v1021 = vld [vmem:[#allocation5 + $0xb0] sm:$0xff]
    %v1022 = vld [vmem:[#allocation5 + $0xb8] sm:$0xff]
    %v1023 = vld [vmem:[#allocation5 + $0xc0] sm:$0xff]
    %v1024 = vld [vmem:[#allocation5 + $0xc8] sm:$0xff]
    %v1025 = vld [vmem:[#allocation5 + $0xd0] sm:$0xff]
    %v1026 = vld [vmem:[#allocation5 + $0xd8] sm:$0xff]
    %v1027 = vld [vmem:[#allocation5 + $0xe0] sm:$0xff]
    %v1028 = vld [vmem:[#allocation5 + $0xe8] sm:$0xff]
    %v1029 = vpack.c.bf16 %v1012, %v1011
    %v1046 = vunpack.c.l.b16 %v1013
    %v1047 = vunpack.c.h.b16 %v1013
    %v1048 = vunpack.c.l.b16 %v1014
    %v1049 = vunpack.c.h.b16 %v1014
    %v1050 = vunpack.c.l.b16 %v1015
    %v1051 = vunpack.c.h.b16 %v1015
    %v1052 = vunpack.c.l.b16 %v1016
    %v1053 = vunpack.c.h.b16 %v1016
    %v1054 = vunpack.c.l.b16 %v1017
    %v1055 = vunpack.c.h.b16 %v1017
    %v1056 = vunpack.c.l.b16 %v1018
    %v1057 = vunpack.c.h.b16 %v1018
    %v1058 = vunpack.c.l.b16 %v1019
    %v1059 = vunpack.c.h.b16 %v1019
    %v1060 = vunpack.c.l.b16 %v1020
    %v1061 = vunpack.c.h.b16 %v1020
    %v1062 = vunpack.c.l.b16 %v1021
    %v1063 = vunpack.c.h.b16 %v1021
    %v1064 = vunpack.c.l.b16 %v1022
    %v1065 = vunpack.c.h.b16 %v1022
    %v1066 = vunpack.c.l.b16 %v1023
    %v1067 = vunpack.c.h.b16 %v1023
    %v1068 = vunpack.c.l.b16 %v1024
    %v1069 = vunpack.c.h.b16 %v1024
    %v1070 = vunpack.c.l.b16 %v1025
    %v1071 = vunpack.c.h.b16 %v1025
    %v1072 = vunpack.c.l.b16 %v1026
    %v1073 = vunpack.c.h.b16 %v1026
    %v1074 = vunpack.c.l.b16 %v1027
    %v1075 = vunpack.c.h.b16 %v1027
    %v1076 = vunpack.c.l.b16 %v1028
    %v1077 = vunpack.c.h.b16 %v1028
    %v1078 = vpack.c.b16 %v1048, %v1046
    %v1079 = vpack.c.b16 %v1049, %v1047
    %v1080 = vpack.c.b16 %v1052, %v1050
    %v1081 = vpack.c.b16 %v1053, %v1051
    %v1082 = vpack.c.b16 %v1056, %v1054
    %v1083 = vpack.c.b16 %v1057, %v1055
    %v1084 = vpack.c.b16 %v1060, %v1058
    %v1085 = vpack.c.b16 %v1061, %v1059
    %v1086 = vpack.c.b16 %v1064, %v1062
    %v1087 = vpack.c.b16 %v1065, %v1063
    %v1088 = vpack.c.b16 %v1068, %v1066
    %v1089 = vpack.c.b16 %v1069, %v1067
    %v1090 = vpack.c.b16 %v1072, %v1070
    %v1091 = vpack.c.b16 %v1073, %v1071
    %v1092 = vpack.c.b16 %v1076, %v1074
    %v1093 = vpack.c.b16 %v1077, %v1075
    %1110 = vmatprep.subr.bf16.mxu0 %v1093
    %1111 = vmatpush1.bf16.msra.mxu0 %v1092
    %1112 = vmatprep.subr.bf16.mxu0 %v1091
    %1113 = vmatpush1.bf16.msra.mxu0 %v1090
    %1114 = vmatprep.subr.bf16.mxu0 %v1089
    %1115 = vmatpush1.bf16.msra.mxu0 %v1088
    %1116 = vmatprep.subr.bf16.mxu0 %v1087
    %1117 = vmatpush1.bf16.msra.mxu0 %v1086
    %1118 = vmatprep.subr.bf16.mxu0 %v1085
    %1119 = vmatpush1.bf16.msra.mxu0 %v1084
    %1120 = vmatprep.subr.bf16.mxu0 %v1083
    %1121 = vmatpush1.bf16.msra.mxu0 %v1082
    %1122 = vmatprep.subr.bf16.mxu0 %v1081
    %1123 = vmatpush1.bf16.msra.mxu0 %v1080
    %1124 = vmatprep.subr.bf16.mxu0 %v1079
    %1125 = vmatpush1.bf16.msra.mxu0 %v1078
    %1126 = vmatprep.subr.bf16.mxu0 0
    %1127 = vmatpush2.bf16.msra.mxu0 0
    %1128 = vmatprep.subr.bf16.mxu0 0
    %1129 = vmatpush2.bf16.msra.mxu0 0
    %1130 = vmatprep.subr.bf16.mxu0 0
    %1131 = vmatpush2.bf16.msra.mxu0 0
    %1132 = vmatprep.subr.bf16.mxu0 0
    %1133 = vmatpush2.bf16.msra.mxu0 0
    %1134 = vmatprep.subr.bf16.mxu0 0
    %1135 = vmatpush2.bf16.msra.mxu0 0
    %1136 = vmatprep.subr.bf16.mxu0 0
    %1137 = vmatpush2.bf16.msra.mxu0 0
    %1138 = vmatprep.subr.bf16.mxu0 0
    %1139 = vmatpush2.bf16.msra.mxu0 0
    %1140 = vmatprep.subr.bf16.mxu0 0
    %1141 = vmatpush2.bf16.msra.mxu0 0
    %1142 = vmatprep.mubr.bf16.mxu0 0
    %1143 = vmatmul.mubr.bf16.gmra.mxu0 %v1029
    %v1144 = vpop.f32.mrf.mxu0
    %v1145 = vadd.f32 0.0, %v1144
    %v1146 = vpop.f32.mrf.mxu0
    %v1147 = vadd.f32 0.0, %v1146
    %v1148 = vpop.f32.mrf.mxu0
    %v1149 = vadd.f32 0.0, %v1148
    %v1150 = vpop.f32.mrf.mxu0
    %v1151 = vadd.f32 0.0, %v1150
    %1152 = vdwg.mxu0
    %s1153 = scalar_lea.vmem [#allocation7], 5
    %v1154 = vld [vmem:[%s1153] ss:$8 sm:$0x3]
    %s1155 = scalar_lea.vmem [#allocation7], 19
    %v1156 = vld [vmem:[%s1155] ss:$8 sm:$0x3]
    %v1157 = vadd.f32 %v1145, %v1149
    %v1158 = vrot.slane %v1157, 4
    %v1159 = vadd.f32 %v1157, %v1158
    %v1160 = vrot.slane %v1159, 2
    %v1161 = vadd.f32 %v1159, %v1160
    %v1162 = vrot.slane %v1161, 1
    %v1163 = vadd.f32 %v1161, %v1162
    %v1164 = vadd.f32 %v1147, %v1151
    %v1165 = vrot.slane %v1164, 4
    %v1166 = vadd.f32 %v1164, %v1165
    %v1167 = vrot.slane %v1166, 2
    %v1168 = vadd.f32 %v1166, %v1167
    %v1169 = vrot.slane %v1168, 1
    %v1170 = vadd.f32 %v1168, %v1169
    %v1171 = vmul.f32 %v1163, 0.0625
    %v1172 = vmul.f32 %v1170, 0.0625
    %v1173 = vsub.f32 %v1145, %v1171
    %v1174 = vsub.f32 %v1147, %v1172
    %v1175 = vsub.f32 %v1149, %v1171
    %v1176 = vsub.f32 %v1151, %v1172
    %v1177 = vmul.f32 %v1173, %v1173
    %v1178 = vmul.f32 %v1174, %v1174
    %v1179 = vmul.f32 %v1175, %v1175
    %v1180 = vmul.f32 %v1176, %v1176
    %v1181 = vadd.f32 %v1177, %v1179
    %v1182 = vrot.slane %v1181, 4
    %v1183 = vadd.f32 %v1181, %v1182
    %v1184 = vrot.slane %v1183, 2
    %v1185 = vadd.f32 %v1183, %v1184
    %v1186 = vrot.slane %v1185, 1
    %v1187 = vadd.f32 %v1185, %v1186
    %v1188 = vadd.f32 %v1178, %v1180
    %v1189 = vrot.slane %v1188, 4
    %v1190 = vadd.f32 %v1188, %v1189
    %v1191 = vrot.slane %v1190, 2
    %v1192 = vadd.f32 %v1190, %v1191
    %v1193 = vrot.slane %v1192, 1
    %v1194 = vadd.f32 %v1192, %v1193
    %v1195 = vmul.f32 %v1187, 0.0625
    %v1196 = vmul.f32 %v1194, 0.0625
    %v1197 = vadd.f32 %v1195, 1e-05
    %v1198 = vadd.f32 %v1196, 1e-05
    %v1199 = vrsqrt.pop %v1197
    %v1200 = vrsqrt.pop %v1198
    %v1203 = vcombine.low %v1199, %v1200
    %v1205 = vunpack.c.l.s4 1966171168
    %v1206 = vunpack.c.0.s8 %v1205
    %v1207 = vlaneseq
    %v1208 = vshrl.u32 %v1207, 7
    %v1209 = vsub.s32 %v1206, %v1208
    %v1210 = vrot.slane %v1203, %v1209
    %v1212 = vunpack.c.l.s4 1966171168
    %v1213 = vunpack.c.0.s8 %v1212
    %v1214 = vlaneseq
    %v1215 = vshrl.u32 %v1214, 7
    %v1216 = vsub.s32 %v1213, %v1215
    %v1217 = vrot.slane %v1210, %v1216
    %v1219 = vmul.f32 %v1154, %v1217
    %v1221 = vlaneseq
    %v1222 = vshrl.u32 %v1221, 7
    %v1223 = vsub.s32 0, %v1222
    %v1224 = vrot.slane %v1219, %v1223
    %v1225 = vlaneseq
    %v1226 = vshrl.u32 %v1225, 7
    %v1227 = vsub.s32 1, %v1226
    %v1228 = vrot.slane %v1219, %v1227
    %v1231 = vmul.f32 %v1173, %v1224
    %v1232 = vmul.f32 %v1174, %v1228
    %v1233 = vmul.f32 %v1175, %v1224
    %v1234 = vmul.f32 %v1176, %v1228
    %v1236 = vlaneseq
    %v1237 = vshrl.u32 %v1236, 7
    %v1238 = vsub.s32 0, %v1237
    %v1239 = vrot.slane %v1156, %v1238
    %v1240 = vlaneseq
    %v1241 = vshrl.u32 %v1240, 7
    %v1242 = vsub.s32 1, %v1241
    %v1243 = vrot.slane %v1156, %v1242
    %v1246 = vadd.f32 %v1231, %v1239
    %v1247 = vadd.f32 %v1232, %v1243
    %v1248 = vadd.f32 %v1233, %v1239
    %v1249 = vadd.f32 %v1234, %v1243
    %v1250 = vmax.f32 %v1246, 0.0
    %v1251 = vmax.f32 %v1247, 0.0
    %v1252 = vmax.f32 %v1248, 0.0
    %v1253 = vmax.f32 %v1249, 0.0
    %v1254 = vld [vmem:[#allocation5 + $0xf4] sm:$0xf]
    %v1255 = vld [vmem:[#allocation5 + $0xfc] sm:$0xf]
    %v1256 = vld [vmem:[#allocation5 + $0x104] sm:$0xf]
    %v1257 = vld [vmem:[#allocation5 + $0x10c] sm:$0xf]
    %v1258 = vld [vmem:[#allocation5 + $0x114] sm:$0xf]
    %v1259 = vld [vmem:[#allocation5 + $0x11c] sm:$0xf]
    %v1260 = vld [vmem:[#allocation5 + $0x124] sm:$0xf]
    %v1261 = vld [vmem:[#allocation5 + $0x12c] sm:$0xf]
    %v1262 = vld [vmem:[#allocation5 + $0x134] sm:$0xf]
    %v1263 = vld [vmem:[#allocation5 + $0x13c] sm:$0xf]
    %v1264 = vld [vmem:[#allocation5 + $0x144] sm:$0xf]
    %v1265 = vld [vmem:[#allocation5 + $0x14c] sm:$0xf]
    %v1266 = vld [vmem:[#allocation5 + $0x154] sm:$0xf]
    %v1267 = vld [vmem:[#allocation5 + $0x15c] sm:$0xf]
    %v1268 = vld [vmem:[#allocation5 + $0x164] sm:$0xf]
    %v1269 = vld [vmem:[#allocation5 + $0x16c] sm:$0xf]
    %v1270 = vld [vmem:[#allocation5 + $0x174] sm:$0xf]
    %v1271 = vld [vmem:[#allocation5 + $0x17c] sm:$0xf]
    %v1272 = vld [vmem:[#allocation5 + $0x184] sm:$0xf]
    %v1273 = vld [vmem:[#allocation5 + $0x18c] sm:$0xf]
    %v1274 = vld [vmem:[#allocation5 + $0x194] sm:$0xf]
    %v1275 = vld [vmem:[#allocation5 + $0x19c] sm:$0xf]
    %v1276 = vld [vmem:[#allocation5 + $0x1a4] sm:$0xf]
    %v1277 = vld [vmem:[#allocation5 + $0x1ac] sm:$0xf]
    %v1278 = vld [vmem:[#allocation5 + $0x1b4] sm:$0xf]
    %v1279 = vld [vmem:[#allocation5 + $0x1bc] sm:$0xf]
    %v1280 = vld [vmem:[#allocation5 + $0x1c4] sm:$0xf]
    %v1281 = vld [vmem:[#allocation5 + $0x1cc] sm:$0xf]
    %v1282 = vld [vmem:[#allocation5 + $0x1d4] sm:$0xf]
    %v1283 = vld [vmem:[#allocation5 + $0x1dc] sm:$0xf]
    %v1284 = vld [vmem:[#allocation5 + $0x1e4] sm:$0xf]
    %v1285 = vld [vmem:[#allocation5 + $0x1ec] sm:$0xf]
    %v1286 = vpack.c.bf16 %v1252, %v1250
    %v1287 = vpack.c.bf16 %v1253, %v1251
    %v1288 = vld [vmem:[#allocation7 + $0x15] ss:$0 sm:$0xff]
    %v1321 = vunpack.c.l.b16 %v1254
    %v1322 = vunpack.c.l.b16 %v1255
    %v1323 = vunpack.c.l.b16 %v1256
    %v1324 = vunpack.c.l.b16 %v1257
    %v1325 = vunpack.c.l.b16 %v1258
    %v1326 = vunpack.c.l.b16 %v1259
    %v1327 = vunpack.c.l.b16 %v1260
    %v1328 = vunpack.c.l.b16 %v1261
    %v1329 = vunpack.c.l.b16 %v1262
    %v1330 = vunpack.c.l.b16 %v1263
    %v1331 = vunpack.c.l.b16 %v1264
    %v1332 = vunpack.c.l.b16 %v1265
    %v1333 = vunpack.c.l.b16 %v1266
    %v1334 = vunpack.c.l.b16 %v1267
    %v1335 = vunpack.c.l.b16 %v1268
    %v1336 = vunpack.c.l.b16 %v1269
    %v1337 = vunpack.c.l.b16 %v1270
    %v1338 = vunpack.c.l.b16 %v1271
    %v1339 = vunpack.c.l.b16 %v1272
    %v1340 = vunpack.c.l.b16 %v1273
    %v1341 = vunpack.c.l.b16 %v1274
    %v1342 = vunpack.c.l.b16 %v1275
    %v1343 = vunpack.c.l.b16 %v1276
    %v1344 = vunpack.c.l.b16 %v1277
    %v1345 = vunpack.c.l.b16 %v1278
    %v1346 = vunpack.c.l.b16 %v1279
    %v1347 = vunpack.c.l.b16 %v1280
    %v1348 = vunpack.c.l.b16 %v1281
    %v1349 = vunpack.c.l.b16 %v1282
    %v1350 = vunpack.c.l.b16 %v1283
    %v1351 = vunpack.c.l.b16 %v1284
    %v1352 = vunpack.c.l.b16 %v1285
    %v1353 = vpack.c.b16 %v1322, %v1321
    %v1354 = vpack.c.b16 %v1324, %v1323
    %v1355 = vpack.c.b16 %v1326, %v1325
    %v1356 = vpack.c.b16 %v1328, %v1327
    %v1357 = vpack.c.b16 %v1330, %v1329
    %v1358 = vpack.c.b16 %v1332, %v1331
    %v1359 = vpack.c.b16 %v1334, %v1333
    %v1360 = vpack.c.b16 %v1336, %v1335
    %v1361 = vpack.c.b16 %v1338, %v1337
    %v1362 = vpack.c.b16 %v1340, %v1339
    %v1363 = vpack.c.b16 %v1342, %v1341
    %v1364 = vpack.c.b16 %v1344, %v1343
    %v1365 = vpack.c.b16 %v1346, %v1345
    %v1366 = vpack.c.b16 %v1348, %v1347
    %v1367 = vpack.c.b16 %v1350, %v1349
    %v1368 = vpack.c.b16 %v1352, %v1351
    %1385 = vmatprep.subr.bf16.mxu0 0
    %1386 = vmatpush1.bf16.msra.mxu0 %v1360
    %1387 = vmatprep.subr.bf16.mxu0 0
    %1388 = vmatpush1.bf16.msra.mxu0 %v1359
    %1389 = vmatprep.subr.bf16.mxu0 0
    %1390 = vmatpush1.bf16.msra.mxu0 %v1358
    %1391 = vmatprep.subr.bf16.mxu0 0
    %1392 = vmatpush1.bf16.msra.mxu0 %v1357
    %1393 = vmatprep.subr.bf16.mxu0 0
    %1394 = vmatpush1.bf16.msra.mxu0 %v1356
    %1395 = vmatprep.subr.bf16.mxu0 0
    %1396 = vmatpush1.bf16.msra.mxu0 %v1355
    %1397 = vmatprep.subr.bf16.mxu0 0
    %1398 = vmatpush1.bf16.msra.mxu0 %v1354
    %1399 = vmatprep.subr.bf16.mxu0 0
    %1400 = vmatpush1.bf16.msra.mxu0 %v1353
    %1401 = vmatprep.subr.bf16.mxu0 0
    %1402 = vmatpush2.bf16.msra.mxu0 %v1368
    %1403 = vmatprep.subr.bf16.mxu0 0
    %1404 = vmatpush2.bf16.msra.mxu0 %v1367
    %1405 = vmatprep.subr.bf16.mxu0 0
    %1406 = vmatpush2.bf16.msra.mxu0 %v1366
    %1407 = vmatprep.subr.bf16.mxu0 0
    %1408 = vmatpush2.bf16.msra.mxu0 %v1365
    %1409 = vmatprep.subr.bf16.mxu0 0
    %1410 = vmatpush2.bf16.msra.mxu0 %v1364
    %1411 = vmatprep.subr.bf16.mxu0 0
    %1412 = vmatpush2.bf16.msra.mxu0 %v1363
    %1413 = vmatprep.subr.bf16.mxu0 0
    %1414 = vmatpush2.bf16.msra.mxu0 %v1362
    %1415 = vmatprep.subr.bf16.mxu0 0
    %1416 = vmatpush2.bf16.msra.mxu0 %v1361
    %1417 = vmatprep.mubr.bf16.mxu0 %v1287
    %1418 = vmatmul.mubr.bf16.gmra.mxu0 %v1286
    %v1419 = vpop.f32.mrf.mxu0
    %v1420 = vadd.f32 %v1288, %v1419
    %v1421 = vpop.f32.mrf.mxu0
    %v1422 = vpop.f32.mrf.mxu0
    %v1423 = vadd.f32 %v1288, %v1422
    %v1424 = vpop.f32.mrf.mxu0
    %1425 = vdwg.mxu0
    %1426 = vst [vmem:[#allocation8 + $0x8] sm:$0xff] %v1420
    %1427 = vst [vmem:[#allocation8 + $0x18] sm:$0xff] %v1423
    // Predicated region
    $region26: #{tpu_custom_call.1} parent=1 // pred_check
      _
    $region27: #{tpu_custom_call.1} parent=1 // pred_check_branch
      %1429 = sbr.rel (0) target = $region29
    $region28: #{tpu_custom_call.1} parent=1 // pred_region
      %s1431 = ssub.s32 512, 512
      %1432 = vsyncadd [#allocation4], %s1431
      %s1433 = sshll.u32 [#allocation8], 4
      %s1434 = int_to_ptr.vmem [resolvable:$true] %s1433
      %1439 = dma.vmem_to_hbm [thread:$0]  %s1434, 512, %s3, [#allocation4], 256, 256, 16
    $region29: #{tpu_custom_call.1} parent=1 // pred_fallthru
      _
    // Predicated region
    $region30: #{tpu_custom_call.1} parent=1 // pred_check
      _
    $region31: #{tpu_custom_call.1} parent=1 // pred_check_branch
      %1441 = sbr.rel (0) target = $region33
    $region32: #{tpu_custom_call.1} parent=1 // pred_region
      %1442 = dma.done [#allocation4], 512
    $region33: #{tpu_custom_call.1} parent=1 // pred_fallthru
      _
    %1443 = vsyncpa [#allocation3], 1
    %1444 = vsyncpa [#allocation6], 1
    %1445 = vsyncpa [#allocation4], 1

</llo_original>
